<compile_context>
chip_gen: v7x
topology: tpu7x:2x2x1
jax: 0.10.0
libtpu: 0.0.40
codegen_flags: <defaults>
</compile_context>

<pallas_src>
import functools

import jax
import jax.numpy as jnp
from jax.experimental import pallas as pl
from jax.experimental.pallas import tpu as pltpu


def _round_up(x, m):
    return (x + m - 1) // m * m


def _gate_dtype():
    """bf16 gate math on v6e/v7x (VPU/EUP have bf16 paths); f32 on v5e/older."""
    try:
        kind = jax.devices()[0].device_kind.lower()
    except Exception:  # pragma: no cover
        kind = ""
    if ("v6" in kind) or ("v7" in kind) or ("7x" in kind):
        return jnp.bfloat16
    return jnp.float32


def lstm_fc_kernel(emb_ref, len_ref, wih_ref, whh_ref, b_ref,
                   wfc_ref, bfc_ref, out_ref, xproj_ref, *, gate_dtype):
    """Fused LSTM recurrence + final linear layer for one batch tile.

    emb_ref:   [L*TB, Ep]   bf16  time-major embedded tokens (this batch tile)
    len_ref:   [TB, Hp]     int32 per-row sequence length broadcast over lanes
    wih_ref:   [Ep, 4*Hp]   bf16  gate-fused input weights   (i, f, o, g)
    whh_ref:   [Hp, 4*Hp]   bf16  gate-fused recurrent weights
    b_ref:     [1, 4*Hp]    f32   fused bias (b_ih + b_hh)
    wfc_ref:   [Hp, Op]     bf16  fc weight
    bfc_ref:   [1, Op]      f32   fc bias
    out_ref:   [TB, Op]     f32   logits (lane-dense store)
    xproj_ref: [L*TB, 4*Hp] f32   VMEM scratch for the hoisted input projection
    """
    LTB, _ = emb_ref.shape
    TB, Hp = len_ref.shape
    L = LTB // TB

    # --- Hoisted input projection: one large, well-shaped MXU matmul ---------
    xproj_ref[...] = (
        jnp.dot(emb_ref[...], wih_ref[...], preferred_element_type=jnp.float32)
        + b_ref[...]
    )

    len_i = len_ref[...]                       # [TB, Hp] int32 (1 vreg, hoisted)

    def step(t, h, c):
        if isinstance(t, int):                 # fully unrolled path
            start = t * TB
        else:                                  # fori_loop path
            start = pl.multiple_of(t * TB, TB)
        x_t = xproj_ref[pl.ds(start, TB), :]                   # [TB, 4*Hp] f32
        # Re-load W_hh from VMEM each step: bounds live ranges, vld is cheap.
        pre = x_t + jnp.dot(h.astype(jnp.bfloat16), whh_ref[...],
                            preferred_element_type=jnp.float32)
        act = pre.astype(gate_dtype)
        sig = jax.nn.sigmoid(act[:, : 3 * Hp])                 # i, f, o slab
        g_g = jnp.tanh(act[:, 3 * Hp:])                        # g slab
        i_g = sig[:, 0 * Hp:1 * Hp]
        f_g = sig[:, 1 * Hp:2 * Hp]
        o_g = sig[:, 2 * Hp:3 * Hp]
        c_new = f_g * c + i_g * g_g            # promotes to f32 accumulation
        h_new = o_g * jnp.tanh(c_new)
        keep = len_i > t
        # pack_padded_sequence freeze: only h needs the select. keep is
        # monotone non-increasing in t, so a frozen row's h is never updated
        # again and c's post-freeze drift can never reach the output.
        h = jnp.where(keep, h_new, h)
        return h, c_new

    h = jnp.zeros((TB, Hp), jnp.float32)
    c = jnp.zeros((TB, Hp), jnp.float32)
    if L <= 16:
        # Full static unroll: lets the scheduler overlap gate math with the
        # next step's MXU push.
        for t in range(L):
            h, c = step(t, h, c)
    else:
        # TODO(synk): unroll factor not tuned; at large L bounding code size /
        # live ranges matters more than full scheduler visibility.
        def body(t, carry):
            return step(t, *carry)
        h, c = jax.lax.fori_loop(0, L, body, (h, c), unroll=2)

    # --- fc(hidden[-1]); dropout is identity in eval mode --------------------
    out_ref[...] = (
        jnp.dot(h.astype(jnp.bfloat16), wfc_ref[...],
                preferred_element_type=jnp.float32)
        + bfc_ref[...]
    )


def simple_rnn_forward(text, lengths, params):
    """text: [B, L] int32, lengths: [B] int32 -> logits [B, output_dim]."""
    B, L = text.shape
    Ep = params["embedding"].shape[1]
    Hp4 = params["w_ih"].shape[1]
    Hp = Hp4 // 4
    Op = params["w_fc"].shape[1]
    O = params["output_dim"]

    # Batch tiling: fill MXU rows per matmul (up to 128 rows/tile); multiple
    # tiles become a "parallel" grid axis (sharded across TCs on v7x).
    TILE_B = min(_round_up(B, 8), 128)
    Bp = _round_up(B, TILE_B)
    n_tiles = Bp // TILE_B

    # --- glue (plain JAX): bf16 embedding gather, layout, padding ------------
    emb = params["embedding"][text]                        # [B, L, Ep] bf16
    # TODO(synk): nn.Dropout is identity at inference; training-mode dropout not modeled.
    emb = jnp.pad(emb, ((0, Bp - B), (0, 0), (0, 0)))      # [Bp, L, Ep]
    emb = emb.reshape(n_tiles, TILE_B, L, Ep).transpose(0, 2, 1, 3)
    emb = emb.reshape(n_tiles, L * TILE_B, Ep)             # per-tile time-major slab

    lengths_p = jnp.pad(lengths.astype(jnp.int32), (0, Bp - B))
    len_b = jnp.broadcast_to(
        lengths_p.reshape(n_tiles, TILE_B)[:, :, None], (n_tiles, TILE_B, Hp)
    ).astype(jnp.int32)

    gate_dtype = _gate_dtype()

    # Explicit VMEM budget: per-tile scratch + double-buffered blocks + slack.
    blk_bytes = (
        L * TILE_B * Ep * 2            # emb tile (bf16)
        + TILE_B * Hp * 4              # lengths tile
        + Ep * Hp4 * 2                 # W_ih (bf16)
        + Hp * Hp4 * 2                 # W_hh (bf16)
        + Hp4 * 4                      # fused bias
        + Hp * Op * 2                  # W_fc (bf16)
        + Op * 4                       # fc bias
        + TILE_B * Op * 4              # output tile
    )
    scratch_bytes = L * TILE_B * Hp4 * 4
    vmem_limit = int(min(max(scratch_bytes + 2 * blk_bytes + (4 << 20),
                             16 << 20), 64 << 20))

    kernel = functools.partial(lstm_fc_kernel, gate_dtype=gate_dtype)

    logits = pl.pallas_call(
        kernel,
        out_shape=jax.ShapeDtypeStruct((Bp, Op), jnp.float32),
        grid=(n_tiles,),
        in_specs=[
            pl.BlockSpec((None, L * TILE_B, Ep), lambda b: (b, 0, 0)),
            pl.BlockSpec((None, TILE_B, Hp), lambda b: (b, 0, 0)),
            pl.BlockSpec((Ep, Hp4), lambda b: (0, 0)),   # weights stay resident
            pl.BlockSpec((Hp, Hp4), lambda b: (0, 0)),
            pl.BlockSpec((1, Hp4), lambda b: (0, 0)),
            pl.BlockSpec((Hp, Op), lambda b: (0, 0)),
            pl.BlockSpec((1, Op), lambda b: (0, 0)),
        ],
        out_specs=pl.BlockSpec((TILE_B, Op), lambda b: (b, 0)),
        scratch_shapes=[pltpu.VMEM((L * TILE_B, Hp4), jnp.float32)],
        compiler_params=pltpu.CompilerParams(
            dimension_semantics=("parallel",),
            vmem_limit_bytes=vmem_limit,
        ),
    )(emb, len_b, params["w_ih"], params["w_hh"], params["b"],
      params["w_fc"], params["b_fc"])

    return logits[:B, :O]                                  # strip padding


def init_params(key, vocab_size, embed_dim, hidden_dim, output_dim, pad_idx=0):
    """Synthetic parameters matching nn.Embedding / nn.LSTM / nn.Linear,
    pre-fused (gate order i, f, o, g) and zero-padded to TPU-aligned shapes."""
    keys = jax.random.split(key, 7)
    emb = 0.1 * jax.random.normal(keys[0], (vocab_size, embed_dim), jnp.float32)
    emb = emb.at[pad_idx].set(0.0)                         # padding_idx row zero

    # PyTorch LSTM raw shapes (native gate order i, f, g, o).
    w_ih = 0.1 * jax.random.normal(keys[1], (4, hidden_dim, embed_dim), jnp.float32)
    w_hh = 0.1 * jax.random.normal(keys[2], (4, hidden_dim, hidden_dim), jnp.float32)
    b_ih = 0.1 * jax.random.normal(keys[3], (4, hidden_dim), jnp.float32)
    b_hh = 0.1 * jax.random.normal(keys[4], (4, hidden_dim), jnp.float32)
    w_fc = 0.1 * jax.random.normal(keys[5], (output_dim, hidden_dim), jnp.float32)
    b_fc = 0.1 * jax.random.normal(keys[6], (output_dim,), jnp.float32)

    H, E, O = hidden_dim, embed_dim, output_dim
    Hp = _round_up(H, 128)
    Ep = _round_up(E, 128)
    Op = _round_up(O, 128)

    # Repack gates (i, f, g, o) -> (i, f, o, g): the three sigmoid gates land
    # in one contiguous [., 3*Hp] lane slab, tanh in the last [., Hp] slab.
    order = jnp.array([0, 1, 3, 2])
    w_ih_r = w_ih[order]
    w_hh_r = w_hh[order]
    b_r = (b_ih + b_hh)[order]

    # Zero padding keeps padded hidden/embed columns inert: padded-gate
    # pre-activations are 0 -> i=f=o=0.5, g=0 -> padded h = c = 0 forever.
    emb_p = jnp.zeros((vocab_size, Ep), jnp.float32).at[:, :E].set(emb)
    wih_f = jnp.zeros((Ep, 4, Hp), jnp.float32).at[:E, :, :H].set(
        jnp.transpose(w_ih_r, (2, 0, 1)))                  # [E, 4, H]
    whh_f = jnp.zeros((Hp, 4, Hp), jnp.float32).at[:H, :, :H].set(
        jnp.transpose(w_hh_r, (2, 0, 1)))                  # [H, 4, H]
    b_f = jnp.zeros((4, Hp), jnp.float32).at[:, :H].set(b_r)

    wfc_p = jnp.zeros((Hp, Op), jnp.float32).at[:H, :O].set(w_fc.T)
    bfc_p = jnp.zeros((1, Op), jnp.float32).at[0, :O].set(b_fc)

    return {
        "embedding": emb_p.astype(jnp.bfloat16),                   # bf16 [V, Ep]
        "w_ih": wih_f.reshape(Ep, 4 * Hp).astype(jnp.bfloat16),    # [Ep, 4*Hp]
        "w_hh": whh_f.reshape(Hp, 4 * Hp).astype(jnp.bfloat16),    # [Hp, 4*Hp]
        "b": b_f.reshape(1, 4 * Hp),                               # f32 [1, 4*Hp]
        "w_fc": wfc_p.astype(jnp.bfloat16),                        # [Hp, Op]
        "b_fc": bfc_p,                                             # f32 [1, Op]
        "hidden_dim": hidden_dim,
        "output_dim": output_dim,
    }


if __name__ == "__main__":
    vocab_size, embed_dim, hidden_dim, output_dim = 50, 32, 32, 2
    B, L = 2, 8
    pad_idx = 0

    key = jax.random.PRNGKey(0)
    kp, kt = jax.random.split(key)
    params = init_params(kp, vocab_size, embed_dim, hidden_dim, output_dim, pad_idx)

    lengths = jnp.array([8, 5], dtype=jnp.int32)           # variable-length sequences
    text = jax.random.randint(kt, (B, L), 1, vocab_size, dtype=jnp.int32)
    text = jnp.where(jnp.arange(L)[None, :] < lengths[:, None], text, pad_idx)

    logits = simple_rnn_forward(text, lengths, params)
    jax.block_until_ready(logits)
    assert logits.shape == (B, output_dim)
    print("KERNEL_OK")
</pallas_src>

<mosaic_0001>
module attributes {stable_mosaic.version = 11 : i64} {
  func.func @lstm_fc_kernel(%arg0: i32, %arg1: memref<1x64x128xbf16, #tpu.memory_space<vmem>>, %arg2: memref<1x8x128xi32, #tpu.memory_space<vmem>>, %arg3: memref<128x512xbf16, #tpu.memory_space<vmem>>, %arg4: memref<128x512xbf16, #tpu.memory_space<vmem>>, %arg5: memref<1x512xf32, #tpu.memory_space<vmem>>, %arg6: memref<128x128xbf16, #tpu.memory_space<vmem>>, %arg7: memref<1x128xf32, #tpu.memory_space<vmem>>, %arg8: memref<8x128xf32, #tpu.memory_space<vmem>>, %arg9: memref<64x512xf32, #tpu.memory_space<vmem>>) attributes {dimension_semantics = [#tpu.dimension_semantics<parallel>], iteration_bounds = array<i64: 1>, scalar_prefetch = 0 : i64, scratch_operands = 1 : i64, tpu.core_type = #tpu.core_type<tc>, window_params = [{transform_indices = @transform_0, window_bounds = array<i64: 1, 64, 128>}, {transform_indices = @transform_1, window_bounds = array<i64: 1, 8, 128>}, {pipeline_mode = #tpu.pipeline_mode<synchronous>, transform_indices = @transform_2, window_bounds = array<i64: 128, 512>}, {pipeline_mode = #tpu.pipeline_mode<synchronous>, transform_indices = @transform_3, window_bounds = array<i64: 128, 512>}, {pipeline_mode = #tpu.pipeline_mode<synchronous>, transform_indices = @transform_4, window_bounds = array<i64: 1, 512>}, {pipeline_mode = #tpu.pipeline_mode<synchronous>, transform_indices = @transform_5, window_bounds = array<i64: 128, 128>}, {pipeline_mode = #tpu.pipeline_mode<synchronous>, transform_indices = @transform_6, window_bounds = array<i64: 1, 128>}, {transform_indices = @transform_7, window_bounds = array<i64: 8, 128>}]} {
    %c0 = arith.constant 0 : index
    %c0_0 = arith.constant 0 : index
    %c0_1 = arith.constant 0 : index
    %0 = vector.load %arg1[%c0, %c0_0, %c0_1] : memref<1x64x128xbf16, #tpu.memory_space<vmem>>, vector<1x64x128xbf16>
    %1 = vector.shape_cast %0 : vector<1x64x128xbf16> to vector<64x128xbf16>
    %c0_2 = arith.constant 0 : index
    %c0_3 = arith.constant 0 : index
    %2 = vector.load %arg3[%c0_2, %c0_3] : memref<128x512xbf16, #tpu.memory_space<vmem>>, vector<128x512xbf16>
    %cst = arith.constant dense<0.000000e+00> : vector<64x512xf32>
    %3 = tpu.matmul %1, %2, %cst {dimension_numbers = #tpu.dot_dimension_numbers<[1], [0], [0], [1], [0, 0, 1, 1], [], []>} : vector<64x128xbf16>, vector<128x512xbf16>, vector<64x512xf32> -> vector<64x512xf32>
    %c0_4 = arith.constant 0 : index
    %c0_5 = arith.constant 0 : index
    %4 = vector.load %arg5[%c0_4, %c0_5] : memref<1x512xf32, #tpu.memory_space<vmem>>, vector<1x512xf32>
    %5 = vector.broadcast %4 : vector<1x512xf32> to vector<64x512xf32>
    %6 = arith.addf %3, %5 : vector<64x512xf32>
    %c0_6 = arith.constant 0 : index
    %c0_7 = arith.constant 0 : index
    %7 = vector.load %arg9[%c0_6, %c0_7] : memref<64x512xf32, #tpu.memory_space<vmem>>, vector<64x512xf32>
    tpu.vector_store %arg9[%c0_6, %c0_7], %6 {strides = array<i32>} : memref<64x512xf32, #tpu.memory_space<vmem>>, vector<64x512xf32>,
    %c0_8 = arith.constant 0 : index
    %c0_9 = arith.constant 0 : index
    %c0_10 = arith.constant 0 : index
    %8 = vector.load %arg2[%c0_8, %c0_9, %c0_10] : memref<1x8x128xi32, #tpu.memory_space<vmem>>, vector<1x8x128xi32>
    %9 = vector.shape_cast %8 : vector<1x8x128xi32> to vector<8x128xi32>
    %cst_11 = arith.constant 0.000000e+00 : f32
    %10 = vector.broadcast %cst_11 : f32 to vector<8x128xf32>
    %cst_12 = arith.constant 0.000000e+00 : f32
    %11 = vector.broadcast %cst_12 : f32 to vector<8x128xf32>
    %c0_13 = arith.constant 0 : index
    %c0_14 = arith.constant 0 : index
    %12 = vector.load %arg9[%c0_13, %c0_14] : memref<64x512xf32, #tpu.memory_space<vmem>>, vector<8x512xf32>
    %13 = arith.truncf %10 : vector<8x128xf32> to vector<8x128xbf16>
    %c0_15 = arith.constant 0 : index
    %c0_16 = arith.constant 0 : index
    %14 = vector.load %arg4[%c0_15, %c0_16] : memref<128x512xbf16, #tpu.memory_space<vmem>>, vector<128x512xbf16>
    %cst_17 = arith.constant dense<0.000000e+00> : vector<8x512xf32>
    %15 = tpu.matmul %13, %14, %cst_17 {dimension_numbers = #tpu.dot_dimension_numbers<[1], [0], [0], [1], [0, 0, 1, 1], [], []>} : vector<8x128xbf16>, vector<128x512xbf16>, vector<8x512xf32> -> vector<8x512xf32>
    %16 = arith.addf %12, %15 : vector<8x512xf32>
    %17 = vector.extract_strided_slice %16 {offsets = [0, 0], sizes = [8, 384], strides = [1, 1]} : vector<8x512xf32> to vector<8x384xf32>
    %18 = arith.negf %17 : vector<8x384xf32>
    %19 = math.exp %18 : vector<8x384xf32>
    %cst_18 = arith.constant 1.000000e+00 : f32
    %20 = vector.broadcast %cst_18 : f32 to vector<8x384xf32>
    %21 = arith.addf %20, %19 : vector<8x384xf32>
    %22 = arith.divf %20, %21 : vector<8x384xf32>
    %23 = vector.extract_strided_slice %16 {offsets = [0, 384], sizes = [8, 128], strides = [1, 1]} : vector<8x512xf32> to vector<8x128xf32>
    %24 = math.tanh %23 : vector<8x128xf32>
    %25 = vector.extract_strided_slice %22 {offsets = [0, 0], sizes = [8, 128], strides = [1, 1]} : vector<8x384xf32> to vector<8x128xf32>
    %26 = vector.extract_strided_slice %22 {offsets = [0, 128], sizes = [8, 128], strides = [1, 1]} : vector<8x384xf32> to vector<8x128xf32>
    %27 = vector.extract_strided_slice %22 {offsets = [0, 256], sizes = [8, 128], strides = [1, 1]} : vector<8x384xf32> to vector<8x128xf32>
    %28 = arith.mulf %26, %11 : vector<8x128xf32>
    %29 = arith.mulf %25, %24 : vector<8x128xf32>
    %30 = arith.addf %28, %29 : vector<8x128xf32>
    %31 = math.tanh %30 : vector<8x128xf32>
    %32 = arith.mulf %27, %31 : vector<8x128xf32>
    %c0_i32 = arith.constant 0 : i32
    %33 = vector.broadcast %c0_i32 : i32 to vector<8x128xi32>
    %34 = arith.cmpi sgt, %9, %33 : vector<8x128xi32>
    %35 = arith.select %34, %32, %10 : vector<8x128xi1>, vector<8x128xf32>
    %c8 = arith.constant 8 : index
    %c0_19 = arith.constant 0 : index
    %36 = vector.load %arg9[%c8, %c0_19] : memref<64x512xf32, #tpu.memory_space<vmem>>, vector<8x512xf32>
    %37 = arith.truncf %35 : vector<8x128xf32> to vector<8x128xbf16>
    %c0_20 = arith.constant 0 : index
    %c0_21 = arith.constant 0 : index
    %38 = vector.load %arg4[%c0_20, %c0_21] : memref<128x512xbf16, #tpu.memory_space<vmem>>, vector<128x512xbf16>
    %cst_22 = arith.constant dense<0.000000e+00> : vector<8x512xf32>
    %39 = tpu.matmul %37, %38, %cst_22 {dimension_numbers = #tpu.dot_dimension_numbers<[1], [0], [0], [1], [0, 0, 1, 1], [], []>} : vector<8x128xbf16>, vector<128x512xbf16>, vector<8x512xf32> -> vector<8x512xf32>
    %40 = arith.addf %36, %39 : vector<8x512xf32>
    %41 = vector.extract_strided_slice %40 {offsets = [0, 0], sizes = [8, 384], strides = [1, 1]} : vector<8x512xf32> to vector<8x384xf32>
    %42 = arith.negf %41 : vector<8x384xf32>
    %43 = math.exp %42 : vector<8x384xf32>
    %cst_23 = arith.constant 1.000000e+00 : f32
    %44 = vector.broadcast %cst_23 : f32 to vector<8x384xf32>
    %45 = arith.addf %44, %43 : vector<8x384xf32>
    %46 = arith.divf %44, %45 : vector<8x384xf32>
    %47 = vector.extract_strided_slice %40 {offsets = [0, 384], sizes = [8, 128], strides = [1, 1]} : vector<8x512xf32> to vector<8x128xf32>
    %48 = math.tanh %47 : vector<8x128xf32>
    %49 = vector.extract_strided_slice %46 {offsets = [0, 0], sizes = [8, 128], strides = [1, 1]} : vector<8x384xf32> to vector<8x128xf32>
    %50 = vector.extract_strided_slice %46 {offsets = [0, 128], sizes = [8, 128], strides = [1, 1]} : vector<8x384xf32> to vector<8x128xf32>
    %51 = vector.extract_strided_slice %46 {offsets = [0, 256], sizes = [8, 128], strides = [1, 1]} : vector<8x384xf32> to vector<8x128xf32>
    %52 = arith.mulf %50, %30 : vector<8x128xf32>
    %53 = arith.mulf %49, %48 : vector<8x128xf32>
    %54 = arith.addf %52, %53 : vector<8x128xf32>
    %55 = math.tanh %54 : vector<8x128xf32>
    %56 = arith.mulf %51, %55 : vector<8x128xf32>
    %c1_i32 = arith.constant 1 : i32
    %57 = vector.broadcast %c1_i32 : i32 to vector<8x128xi32>
    %58 = arith.cmpi sgt, %9, %57 : vector<8x128xi32>
    %59 = arith.select %58, %56, %35 : vector<8x128xi1>, vector<8x128xf32>
    %c16 = arith.constant 16 : index
    %c0_24 = arith.constant 0 : index
    %60 = vector.load %arg9[%c16, %c0_24] : memref<64x512xf32, #tpu.memory_space<vmem>>, vector<8x512xf32>
    %61 = arith.truncf %59 : vector<8x128xf32> to vector<8x128xbf16>
    %c0_25 = arith.constant 0 : index
    %c0_26 = arith.constant 0 : index
    %62 = vector.load %arg4[%c0_25, %c0_26] : memref<128x512xbf16, #tpu.memory_space<vmem>>, vector<128x512xbf16>
    %cst_27 = arith.constant dense<0.000000e+00> : vector<8x512xf32>
    %63 = tpu.matmul %61, %62, %cst_27 {dimension_numbers = #tpu.dot_dimension_numbers<[1], [0], [0], [1], [0, 0, 1, 1], [], []>} : vector<8x128xbf16>, vector<128x512xbf16>, vector<8x512xf32> -> vector<8x512xf32>
    %64 = arith.addf %60, %63 : vector<8x512xf32>
    %65 = vector.extract_strided_slice %64 {offsets = [0, 0], sizes = [8, 384], strides = [1, 1]} : vector<8x512xf32> to vector<8x384xf32>
    %66 = arith.negf %65 : vector<8x384xf32>
    %67 = math.exp %66 : vector<8x384xf32>
    %cst_28 = arith.constant 1.000000e+00 : f32
    %68 = vector.broadcast %cst_28 : f32 to vector<8x384xf32>
    %69 = arith.addf %68, %67 : vector<8x384xf32>
    %70 = arith.divf %68, %69 : vector<8x384xf32>
    %71 = vector.extract_strided_slice %64 {offsets = [0, 384], sizes = [8, 128], strides = [1, 1]} : vector<8x512xf32> to vector<8x128xf32>
    %72 = math.tanh %71 : vector<8x128xf32>
    %73 = vector.extract_strided_slice %70 {offsets = [0, 0], sizes = [8, 128], strides = [1, 1]} : vector<8x384xf32> to vector<8x128xf32>
    %74 = vector.extract_strided_slice %70 {offsets = [0, 128], sizes = [8, 128], strides = [1, 1]} : vector<8x384xf32> to vector<8x128xf32>
    %75 = vector.extract_strided_slice %70 {offsets = [0, 256], sizes = [8, 128], strides = [1, 1]} : vector<8x384xf32> to vector<8x128xf32>
    %76 = arith.mulf %74, %54 : vector<8x128xf32>
    %77 = arith.mulf %73, %72 : vector<8x128xf32>
    %78 = arith.addf %76, %77 : vector<8x128xf32>
    %79 = math.tanh %78 : vector<8x128xf32>
    %80 = arith.mulf %75, %79 : vector<8x128xf32>
    %c2_i32 = arith.constant 2 : i32
    %81 = vector.broadcast %c2_i32 : i32 to vector<8x128xi32>
    %82 = arith.cmpi sgt, %9, %81 : vector<8x128xi32>
    %83 = arith.select %82, %80, %59 : vector<8x128xi1>, vector<8x128xf32>
    %c24 = arith.constant 24 : index
    %c0_29 = arith.constant 0 : index
    %84 = vector.load %arg9[%c24, %c0_29] : memref<64x512xf32, #tpu.memory_space<vmem>>, vector<8x512xf32>
    %85 = arith.truncf %83 : vector<8x128xf32> to vector<8x128xbf16>
    %c0_30 = arith.constant 0 : index
    %c0_31 = arith.constant 0 : index
    %86 = vector.load %arg4[%c0_30, %c0_31] : memref<128x512xbf16, #tpu.memory_space<vmem>>, vector<128x512xbf16>
    %cst_32 = arith.constant dense<0.000000e+00> : vector<8x512xf32>
    %87 = tpu.matmul %85, %86, %cst_32 {dimension_numbers = #tpu.dot_dimension_numbers<[1], [0], [0], [1], [0, 0, 1, 1], [], []>} : vector<8x128xbf16>, vector<128x512xbf16>, vector<8x512xf32> -> vector<8x512xf32>
    %88 = arith.addf %84, %87 : vector<8x512xf32>
    %89 = vector.extract_strided_slice %88 {offsets = [0, 0], sizes = [8, 384], strides = [1, 1]} : vector<8x512xf32> to vector<8x384xf32>
    %90 = arith.negf %89 : vector<8x384xf32>
    %91 = math.exp %90 : vector<8x384xf32>
    %cst_33 = arith.constant 1.000000e+00 : f32
    %92 = vector.broadcast %cst_33 : f32 to vector<8x384xf32>
    %93 = arith.addf %92, %91 : vector<8x384xf32>
    %94 = arith.divf %92, %93 : vector<8x384xf32>
    %95 = vector.extract_strided_slice %88 {offsets = [0, 384], sizes = [8, 128], strides = [1, 1]} : vector<8x512xf32> to vector<8x128xf32>
    %96 = math.tanh %95 : vector<8x128xf32>
    %97 = vector.extract_strided_slice %94 {offsets = [0, 0], sizes = [8, 128], strides = [1, 1]} : vector<8x384xf32> to vector<8x128xf32>
    %98 = vector.extract_strided_slice %94 {offsets = [0, 128], sizes = [8, 128], strides = [1, 1]} : vector<8x384xf32> to vector<8x128xf32>
    %99 = vector.extract_strided_slice %94 {offsets = [0, 256], sizes = [8, 128], strides = [1, 1]} : vector<8x384xf32> to vector<8x128xf32>
    %100 = arith.mulf %98, %78 : vector<8x128xf32>
    %101 = arith.mulf %97, %96 : vector<8x128xf32>
    %102 = arith.addf %100, %101 : vector<8x128xf32>
    %103 = math.tanh %102 : vector<8x128xf32>
    %104 = arith.mulf %99, %103 : vector<8x128xf32>
    %c3_i32 = arith.constant 3 : i32
    %105 = vector.broadcast %c3_i32 : i32 to vector<8x128xi32>
    %106 = arith.cmpi sgt, %9, %105 : vector<8x128xi32>
    %107 = arith.select %106, %104, %83 : vector<8x128xi1>, vector<8x128xf32>
    %c32 = arith.constant 32 : index
    %c0_34 = arith.constant 0 : index
    %108 = vector.load %arg9[%c32, %c0_34] : memref<64x512xf32, #tpu.memory_space<vmem>>, vector<8x512xf32>
    %109 = arith.truncf %107 : vector<8x128xf32> to vector<8x128xbf16>
    %c0_35 = arith.constant 0 : index
    %c0_36 = arith.constant 0 : index
    %110 = vector.load %arg4[%c0_35, %c0_36] : memref<128x512xbf16, #tpu.memory_space<vmem>>, vector<128x512xbf16>
    %cst_37 = arith.constant dense<0.000000e+00> : vector<8x512xf32>
    %111 = tpu.matmul %109, %110, %cst_37 {dimension_numbers = #tpu.dot_dimension_numbers<[1], [0], [0], [1], [0, 0, 1, 1], [], []>} : vector<8x128xbf16>, vector<128x512xbf16>, vector<8x512xf32> -> vector<8x512xf32>
    %112 = arith.addf %108, %111 : vector<8x512xf32>
    %113 = vector.extract_strided_slice %112 {offsets = [0, 0], sizes = [8, 384], strides = [1, 1]} : vector<8x512xf32> to vector<8x384xf32>
    %114 = arith.negf %113 : vector<8x384xf32>
    %115 = math.exp %114 : vector<8x384xf32>
    %cst_38 = arith.constant 1.000000e+00 : f32
    %116 = vector.broadcast %cst_38 : f32 to vector<8x384xf32>
    %117 = arith.addf %116, %115 : vector<8x384xf32>
    %118 = arith.divf %116, %117 : vector<8x384xf32>
    %119 = vector.extract_strided_slice %112 {offsets = [0, 384], sizes = [8, 128], strides = [1, 1]} : vector<8x512xf32> to vector<8x128xf32>
    %120 = math.tanh %119 : vector<8x128xf32>
    %121 = vector.extract_strided_slice %118 {offsets = [0, 0], sizes = [8, 128], strides = [1, 1]} : vector<8x384xf32> to vector<8x128xf32>
    %122 = vector.extract_strided_slice %118 {offsets = [0, 128], sizes = [8, 128], strides = [1, 1]} : vector<8x384xf32> to vector<8x128xf32>
    %123 = vector.extract_strided_slice %118 {offsets = [0, 256], sizes = [8, 128], strides = [1, 1]} : vector<8x384xf32> to vector<8x128xf32>
    %124 = arith.mulf %122, %102 : vector<8x128xf32>
    %125 = arith.mulf %121, %120 : vector<8x128xf32>
    %126 = arith.addf %124, %125 : vector<8x128xf32>
    %127 = math.tanh %126 : vector<8x128xf32>
    %128 = arith.mulf %123, %127 : vector<8x128xf32>
    %c4_i32 = arith.constant 4 : i32
    %129 = vector.broadcast %c4_i32 : i32 to vector<8x128xi32>
    %130 = arith.cmpi sgt, %9, %129 : vector<8x128xi32>
    %131 = arith.select %130, %128, %107 : vector<8x128xi1>, vector<8x128xf32>
    %c40 = arith.constant 40 : index
    %c0_39 = arith.constant 0 : index
    %132 = vector.load %arg9[%c40, %c0_39] : memref<64x512xf32, #tpu.memory_space<vmem>>, vector<8x512xf32>
    %133 = arith.truncf %131 : vector<8x128xf32> to vector<8x128xbf16>
    %c0_40 = arith.constant 0 : index
    %c0_41 = arith.constant 0 : index
    %134 = vector.load %arg4[%c0_40, %c0_41] : memref<128x512xbf16, #tpu.memory_space<vmem>>, vector<128x512xbf16>
    %cst_42 = arith.constant dense<0.000000e+00> : vector<8x512xf32>
    %135 = tpu.matmul %133, %134, %cst_42 {dimension_numbers = #tpu.dot_dimension_numbers<[1], [0], [0], [1], [0, 0, 1, 1], [], []>} : vector<8x128xbf16>, vector<128x512xbf16>, vector<8x512xf32> -> vector<8x512xf32>
    %136 = arith.addf %132, %135 : vector<8x512xf32>
    %137 = vector.extract_strided_slice %136 {offsets = [0, 0], sizes = [8, 384], strides = [1, 1]} : vector<8x512xf32> to vector<8x384xf32>
    %138 = arith.negf %137 : vector<8x384xf32>
    %139 = math.exp %138 : vector<8x384xf32>
    %cst_43 = arith.constant 1.000000e+00 : f32
    %140 = vector.broadcast %cst_43 : f32 to vector<8x384xf32>
    %141 = arith.addf %140, %139 : vector<8x384xf32>
    %142 = arith.divf %140, %141 : vector<8x384xf32>
    %143 = vector.extract_strided_slice %136 {offsets = [0, 384], sizes = [8, 128], strides = [1, 1]} : vector<8x512xf32> to vector<8x128xf32>
    %144 = math.tanh %143 : vector<8x128xf32>
    %145 = vector.extract_strided_slice %142 {offsets = [0, 0], sizes = [8, 128], strides = [1, 1]} : vector<8x384xf32> to vector<8x128xf32>
    %146 = vector.extract_strided_slice %142 {offsets = [0, 128], sizes = [8, 128], strides = [1, 1]} : vector<8x384xf32> to vector<8x128xf32>
    %147 = vector.extract_strided_slice %142 {offsets = [0, 256], sizes = [8, 128], strides = [1, 1]} : vector<8x384xf32> to vector<8x128xf32>
    %148 = arith.mulf %146, %126 : vector<8x128xf32>
    %149 = arith.mulf %145, %144 : vector<8x128xf32>
    %150 = arith.addf %148, %149 : vector<8x128xf32>
    %151 = math.tanh %150 : vector<8x128xf32>
    %152 = arith.mulf %147, %151 : vector<8x128xf32>
    %c5_i32 = arith.constant 5 : i32
    %153 = vector.broadcast %c5_i32 : i32 to vector<8x128xi32>
    %154 = arith.cmpi sgt, %9, %153 : vector<8x128xi32>
    %155 = arith.select %154, %152, %131 : vector<8x128xi1>, vector<8x128xf32>
    %c48 = arith.constant 48 : index
    %c0_44 = arith.constant 0 : index
    %156 = vector.load %arg9[%c48, %c0_44] : memref<64x512xf32, #tpu.memory_space<vmem>>, vector<8x512xf32>
    %157 = arith.truncf %155 : vector<8x128xf32> to vector<8x128xbf16>
    %c0_45 = arith.constant 0 : index
    %c0_46 = arith.constant 0 : index
    %158 = vector.load %arg4[%c0_45, %c0_46] : memref<128x512xbf16, #tpu.memory_space<vmem>>, vector<128x512xbf16>
    %cst_47 = arith.constant dense<0.000000e+00> : vector<8x512xf32>
    %159 = tpu.matmul %157, %158, %cst_47 {dimension_numbers = #tpu.dot_dimension_numbers<[1], [0], [0], [1], [0, 0, 1, 1], [], []>} : vector<8x128xbf16>, vector<128x512xbf16>, vector<8x512xf32> -> vector<8x512xf32>
    %160 = arith.addf %156, %159 : vector<8x512xf32>
    %161 = vector.extract_strided_slice %160 {offsets = [0, 0], sizes = [8, 384], strides = [1, 1]} : vector<8x512xf32> to vector<8x384xf32>
    %162 = arith.negf %161 : vector<8x384xf32>
    %163 = math.exp %162 : vector<8x384xf32>
    %cst_48 = arith.constant 1.000000e+00 : f32
    %164 = vector.broadcast %cst_48 : f32 to vector<8x384xf32>
    %165 = arith.addf %164, %163 : vector<8x384xf32>
    %166 = arith.divf %164, %165 : vector<8x384xf32>
    %167 = vector.extract_strided_slice %160 {offsets = [0, 384], sizes = [8, 128], strides = [1, 1]} : vector<8x512xf32> to vector<8x128xf32>
    %168 = math.tanh %167 : vector<8x128xf32>
    %169 = vector.extract_strided_slice %166 {offsets = [0, 0], sizes = [8, 128], strides = [1, 1]} : vector<8x384xf32> to vector<8x128xf32>
    %170 = vector.extract_strided_slice %166 {offsets = [0, 128], sizes = [8, 128], strides = [1, 1]} : vector<8x384xf32> to vector<8x128xf32>
    %171 = vector.extract_strided_slice %166 {offsets = [0, 256], sizes = [8, 128], strides = [1, 1]} : vector<8x384xf32> to vector<8x128xf32>
    %172 = arith.mulf %170, %150 : vector<8x128xf32>
    %173 = arith.mulf %169, %168 : vector<8x128xf32>
    %174 = arith.addf %172, %173 : vector<8x128xf32>
    %175 = math.tanh %174 : vector<8x128xf32>
    %176 = arith.mulf %171, %175 : vector<8x128xf32>
    %c6_i32 = arith.constant 6 : i32
    %177 = vector.broadcast %c6_i32 : i32 to vector<8x128xi32>
    %178 = arith.cmpi sgt, %9, %177 : vector<8x128xi32>
    %179 = arith.select %178, %176, %155 : vector<8x128xi1>, vector<8x128xf32>
    %c56 = arith.constant 56 : index
    %c0_49 = arith.constant 0 : index
    %180 = vector.load %arg9[%c56, %c0_49] : memref<64x512xf32, #tpu.memory_space<vmem>>, vector<8x512xf32>
    %181 = arith.truncf %179 : vector<8x128xf32> to vector<8x128xbf16>
    %c0_50 = arith.constant 0 : index
    %c0_51 = arith.constant 0 : index
    %182 = vector.load %arg4[%c0_50, %c0_51] : memref<128x512xbf16, #tpu.memory_space<vmem>>, vector<128x512xbf16>
    %cst_52 = arith.constant dense<0.000000e+00> : vector<8x512xf32>
    %183 = tpu.matmul %181, %182, %cst_52 {dimension_numbers = #tpu.dot_dimension_numbers<[1], [0], [0], [1], [0, 0, 1, 1], [], []>} : vector<8x128xbf16>, vector<128x512xbf16>, vector<8x512xf32> -> vector<8x512xf32>
    %184 = arith.addf %180, %183 : vector<8x512xf32>
    %185 = vector.extract_strided_slice %184 {offsets = [0, 0], sizes = [8, 384], strides = [1, 1]} : vector<8x512xf32> to vector<8x384xf32>
    %186 = arith.negf %185 : vector<8x384xf32>
    %187 = math.exp %186 : vector<8x384xf32>
    %cst_53 = arith.constant 1.000000e+00 : f32
    %188 = vector.broadcast %cst_53 : f32 to vector<8x384xf32>
    %189 = arith.addf %188, %187 : vector<8x384xf32>
    %190 = arith.divf %188, %189 : vector<8x384xf32>
    %191 = vector.extract_strided_slice %184 {offsets = [0, 384], sizes = [8, 128], strides = [1, 1]} : vector<8x512xf32> to vector<8x128xf32>
    %192 = math.tanh %191 : vector<8x128xf32>
    %193 = vector.extract_strided_slice %190 {offsets = [0, 0], sizes = [8, 128], strides = [1, 1]} : vector<8x384xf32> to vector<8x128xf32>
    %194 = vector.extract_strided_slice %190 {offsets = [0, 128], sizes = [8, 128], strides = [1, 1]} : vector<8x384xf32> to vector<8x128xf32>
    %195 = vector.extract_strided_slice %190 {offsets = [0, 256], sizes = [8, 128], strides = [1, 1]} : vector<8x384xf32> to vector<8x128xf32>
    %196 = arith.mulf %194, %174 : vector<8x128xf32>
    %197 = arith.mulf %193, %192 : vector<8x128xf32>
    %198 = arith.addf %196, %197 : vector<8x128xf32>
    %199 = math.tanh %198 : vector<8x128xf32>
    %200 = arith.mulf %195, %199 : vector<8x128xf32>
    %c7_i32 = arith.constant 7 : i32
    %201 = vector.broadcast %c7_i32 : i32 to vector<8x128xi32>
    %202 = arith.cmpi sgt, %9, %201 : vector<8x128xi32>
    %203 = arith.select %202, %200, %179 : vector<8x128xi1>, vector<8x128xf32>
    %204 = arith.truncf %203 : vector<8x128xf32> to vector<8x128xbf16>
    %c0_54 = arith.constant 0 : index
    %c0_55 = arith.constant 0 : index
    %205 = vector.load %arg6[%c0_54, %c0_55] : memref<128x128xbf16, #tpu.memory_space<vmem>>, vector<128x128xbf16>
    %cst_56 = arith.constant dense<0.000000e+00> : vector<8x128xf32>
    %206 = tpu.matmul %204, %205, %cst_56 {dimension_numbers = #tpu.dot_dimension_numbers<[1], [0], [0], [1], [0, 0, 1, 1], [], []>} : vector<8x128xbf16>, vector<128x128xbf16>, vector<8x128xf32> -> vector<8x128xf32>
    %c0_57 = arith.constant 0 : index
    %c0_58 = arith.constant 0 : index
    %207 = vector.load %arg7[%c0_57, %c0_58] : memref<1x128xf32, #tpu.memory_space<vmem>>, vector<1x128xf32>
    %208 = vector.broadcast %207 : vector<1x128xf32> to vector<8x128xf32>
    %209 = arith.addf %206, %208 : vector<8x128xf32>
    %c0_59 = arith.constant 0 : index
    %c0_60 = arith.constant 0 : index
    %210 = vector.load %arg8[%c0_59, %c0_60] : memref<8x128xf32, #tpu.memory_space<vmem>>, vector<8x128xf32>
    tpu.vector_store %arg8[%c0_59, %c0_60], %209 {strides = array<i32>} : memref<8x128xf32, #tpu.memory_space<vmem>>, vector<8x128xf32>,
    return
  }
  func.func @transform_0(%arg0: i32) -> (i32, i32, i32) {
    %c0_i32 = arith.constant 0 : i32
    %c0_i32_0 = arith.constant 0 : i32
    %c0_i32_1 = arith.constant 0 : i32
    return %arg0, %c0_i32, %c0_i32_0 : i32, i32, i32
  }
  func.func @transform_1(%arg0: i32) -> (i32, i32, i32) {
    %c0_i32 = arith.constant 0 : i32
    %c0_i32_0 = arith.constant 0 : i32
    %c0_i32_1 = arith.constant 0 : i32
    return %arg0, %c0_i32, %c0_i32_0 : i32, i32, i32
  }
  func.func @transform_2(%arg0: i32) -> (i32, i32) {
    %c0_i32 = arith.constant 0 : i32
    %c0_i32_0 = arith.constant 0 : i32
    %c0_i32_1 = arith.constant 0 : i32
    return %c0_i32, %c0_i32_0 : i32, i32
  }
  func.func @transform_3(%arg0: i32) -> (i32, i32) {
    %c0_i32 = arith.constant 0 : i32
    %c0_i32_0 = arith.constant 0 : i32
    %c0_i32_1 = arith.constant 0 : i32
    return %c0_i32, %c0_i32_0 : i32, i32
  }
  func.func @transform_4(%arg0: i32) -> (i32, i32) {
    %c0_i32 = arith.constant 0 : i32
    %c0_i32_0 = arith.constant 0 : i32
    %c0_i32_1 = arith.constant 0 : i32
    return %c0_i32, %c0_i32_0 : i32, i32
  }
  func.func @transform_5(%arg0: i32) -> (i32, i32) {
    %c0_i32 = arith.constant 0 : i32
    %c0_i32_0 = arith.constant 0 : i32
    %c0_i32_1 = arith.constant 0 : i32
    return %c0_i32, %c0_i32_0 : i32, i32
  }
  func.func @transform_6(%arg0: i32) -> (i32, i32) {
    %c0_i32 = arith.constant 0 : i32
    %c0_i32_0 = arith.constant 0 : i32
    %c0_i32_1 = arith.constant 0 : i32
    return %c0_i32, %c0_i32_0 : i32, i32
  }
  func.func @transform_7(%arg0: i32) -> (i32, i32) {
    %c0_i32 = arith.constant 0 : i32
    %c0_i32_0 = arith.constant 0 : i32
    return %arg0, %c0_i32 : i32, i32
  }
}

</mosaic_0001>

<llo_original>
// kernel: tpu_custom_call.1
$region0: #{tpu_custom_call.1}
  #allocation0 [shape = 'u32[]', space=smem, size = 0x4, offset = 0x4, fixed_abs, tag = 'smem constant byte address 0x4 - core index']
  #allocation1 [shape = 'u32[144,128]{1,0:T(1,128)}', space=vmem, size = 0x12000, scoped, tag = 'internal scratch']
  #allocation2 [shape = 'f32[64,512]{1,0:T(8,128)}', space=vmem, size = 0x20000, scoped, tag = 'scratch operand']
  %s0 = inlined_call_operand.hbm [shape: bf16[1,64,128], index: 0, kind: input, shape index: {}]
  %s1 = inlined_call_operand.hbm [shape: s32[1,8,128], index: 1, kind: input, shape index: {}]
  %s2 = inlined_call_operand.hbm [shape: bf16[128,512], index: 2, kind: input, shape index: {}]
  %s3 = inlined_call_operand.hbm [shape: bf16[128,512], index: 3, kind: input, shape index: {}]
  %s4 = inlined_call_operand.vmem [shape: f32[1,512], index: 4, kind: input, shape index: {}]
  %s5 = inlined_call_operand.hbm [shape: bf16[128,128], index: 5, kind: input, shape index: {}]
  %s6 = inlined_call_operand.vmem [shape: f32[1,128], index: 6, kind: input, shape index: {}]
  %s7 = inlined_call_operand.hbm [shape: f32[8,128], index: 7, kind: output, shape index: {}]
  %s8 = sld [smem:[#allocation0]]
  $region58: #{tpu_custom_call.1} parent=0
    _
  %s10 = ssub.s32 1, %s8
  %s11 = scalar_select 0, %s10, %s8
  $region1: #{tpu_custom_call.1} parent=0
    #allocation3 [shape = 'u8[16384]{0}', space=vmem, size = 0x4000, scoped, tag = 'input window, operand 0, single buffered']
    #allocation4 [shape = 's32[1]{0}', space=sflag, size = 0x4, scoped, tag = 'scoped memory for tpu_custom_call.1']
    #allocation5 [shape = 's32[1]{0}', space=sflag, size = 0x4, scoped, tag = 'scoped memory for tpu_custom_call.1']
    #allocation6 [shape = 'u8[4096]{0}', space=vmem, size = 0x1000, scoped, tag = 'input window, operand 1, single buffered']
    #allocation7 [shape = 's32[1]{0}', space=sflag, size = 0x4, scoped, tag = 'scoped memory for tpu_custom_call.1']
    #allocation8 [shape = 'u8[131072]{0}', space=vmem, size = 0x20000, scoped, tag = 'input window, operand 2, single buffered']
    #allocation9 [shape = 'u8[131072]{0}', space=vmem, size = 0x20000, scoped, tag = 'input window, operand 3, single buffered']
    #allocation10 [shape = 's32[1]{0}', space=sflag, size = 0x4, scoped, tag = 'scoped memory for tpu_custom_call.1']
    #allocation11 [shape = 'u8[32768]{0}', space=vmem, size = 0x8000, scoped, tag = 'input window, operand 5, single buffered']
    #allocation12 [shape = 'u8[4096]{0}', space=vmem, size = 0x1000, scoped, tag = 'output window, operand 0, single buffered']
    %12 = vsyncpa [#allocation4], 0
    %13 = vsyncpa [#allocation7], 0
    %14 = vsyncpa [#allocation10], 0
    %15 = vsyncpa [#allocation5], 0
    // Predicated region
    $region2: #{tpu_custom_call.1} parent=1 // pred_check
      _
    $region3: #{tpu_custom_call.1} parent=1 // pred_check_branch
      %17 = sbr.rel (0) target = $region5
    $region4: #{tpu_custom_call.1} parent=1 // pred_region
      %s19 = ssub.s32 512, 512
      %20 = vsyncadd [#allocation4], %s19
      %s21 = sshll.u32 [#allocation3], 4
      %s22 = int_to_ptr.vmem [resolvable:$true] %s21
      %27 = dma.hbm_to_vmem [thread:$0]  %s0, 512, %s22, [#allocation4], 64, 64, 4
    $region5: #{tpu_custom_call.1} parent=1 // pred_fallthru
      _
    // Predicated region
    $region6: #{tpu_custom_call.1} parent=1 // pred_check
      _
    $region7: #{tpu_custom_call.1} parent=1 // pred_check_branch
      %29 = sbr.rel (0) target = $region9
    $region8: #{tpu_custom_call.1} parent=1 // pred_region
      %s31 = ssub.s32 128, 128
      %32 = vsyncadd [#allocation7], %s31
      %s34 = sshll.u32 [#allocation6], 4
      %s35 = int_to_ptr.vmem [resolvable:$true] %s34
      %37 = dma.hbm_to_vmem [thread:$0]  %s1, 128, %s35, [#allocation7]
    $region9: #{tpu_custom_call.1} parent=1 // pred_fallthru
      _
    // Predicated region
    $region10: #{tpu_custom_call.1} parent=1 // pred_check
      _
    $region11: #{tpu_custom_call.1} parent=1 // pred_check_branch
      %39 = sbr.rel (0) target = $region13
    $region12: #{tpu_custom_call.1} parent=1 // pred_region
      %s41 = ssub.s32 4096, 4096
      %42 = vsyncadd [#allocation7], %s41
      %s43 = sshll.u32 [#allocation8], 4
      %s44 = int_to_ptr.vmem [resolvable:$true] %s43
      %49 = dma.hbm_to_vmem [thread:$0]  %s2, 4096, %s44, [#allocation7], 256, 256, 16
    $region13: #{tpu_custom_call.1} parent=1 // pred_fallthru
      _
    // Predicated region
    $region14: #{tpu_custom_call.1} parent=1 // pred_check
      _
    $region15: #{tpu_custom_call.1} parent=1 // pred_check_branch
      %51 = sbr.rel (0) target = $region17
    $region16: #{tpu_custom_call.1} parent=1 // pred_region
      %s53 = ssub.s32 4096, 4096
      %54 = vsyncadd [#allocation10], %s53
      %s55 = sshll.u32 [#allocation9], 4
      %s56 = int_to_ptr.vmem [resolvable:$true] %s55
      %61 = dma.hbm_to_vmem [thread:$0]  %s3, 4096, %s56, [#allocation10], 256, 256, 16
    $region17: #{tpu_custom_call.1} parent=1 // pred_fallthru
      _
    // Predicated region
    $region18: #{tpu_custom_call.1} parent=1 // pred_check
      _
    $region19: #{tpu_custom_call.1} parent=1 // pred_check_branch
      %63 = sbr.rel (0) target = $region21
    $region20: #{tpu_custom_call.1} parent=1 // pred_region
      _
    $region21: #{tpu_custom_call.1} parent=1 // pred_fallthru
      _
    // Predicated region
    $region22: #{tpu_custom_call.1} parent=1 // pred_check
      _
    $region23: #{tpu_custom_call.1} parent=1 // pred_check_branch
      %65 = sbr.rel (0) target = $region25
    $region24: #{tpu_custom_call.1} parent=1 // pred_region
      %s67 = ssub.s32 1024, 1024
      %68 = vsyncadd [#allocation10], %s67
      %s69 = sshll.u32 [#allocation11], 4
      %s70 = int_to_ptr.vmem [resolvable:$true] %s69
      %75 = dma.hbm_to_vmem [thread:$0]  %s5, 1024, %s70, [#allocation10], 64, 64, 4
    $region25: #{tpu_custom_call.1} parent=1 // pred_fallthru
      _
    // Predicated region
    $region26: #{tpu_custom_call.1} parent=1 // pred_check
      _
    $region27: #{tpu_custom_call.1} parent=1 // pred_check_branch
      %77 = sbr.rel (0) target = $region29
    $region28: #{tpu_custom_call.1} parent=1 // pred_region
      _
    $region29: #{tpu_custom_call.1} parent=1 // pred_fallthru
      _
    // Predicated region
    $region30: #{tpu_custom_call.1} parent=1 // pred_check
      _
    $region31: #{tpu_custom_call.1} parent=1 // pred_check_branch
      %79 = sbr.rel (0) target = $region33
    $region32: #{tpu_custom_call.1} parent=1 // pred_region
      %80 = dma.done [#allocation4], 512
    $region33: #{tpu_custom_call.1} parent=1 // pred_fallthru
      _
    // Predicated region
    $region34: #{tpu_custom_call.1} parent=1 // pred_check
      _
    $region35: #{tpu_custom_call.1} parent=1 // pred_check_branch
      %82 = sbr.rel (0) target = $region37
    $region36: #{tpu_custom_call.1} parent=1 // pred_region
      %83 = dma.done [#allocation7], 128
    $region37: #{tpu_custom_call.1} parent=1 // pred_fallthru
      _
    // Predicated region
    $region38: #{tpu_custom_call.1} parent=1 // pred_check
      _
    $region39: #{tpu_custom_call.1} parent=1 // pred_check_branch
      %85 = sbr.rel (0) target = $region41
    $region40: #{tpu_custom_call.1} parent=1 // pred_region
      %86 = dma.done [#allocation7], 4096
    $region41: #{tpu_custom_call.1} parent=1 // pred_fallthru
      _
    // Predicated region
    $region42: #{tpu_custom_call.1} parent=1 // pred_check
      _
    $region43: #{tpu_custom_call.1} parent=1 // pred_check_branch
      %88 = sbr.rel (0) target = $region45
    $region44: #{tpu_custom_call.1} parent=1 // pred_region
      %89 = dma.done [#allocation10], 4096
    $region45: #{tpu_custom_call.1} parent=1 // pred_fallthru
      _
    // Predicated region
    $region46: #{tpu_custom_call.1} parent=1 // pred_check
      _
    $region47: #{tpu_custom_call.1} parent=1 // pred_check_branch
      %91 = sbr.rel (0) target = $region49
    $region48: #{tpu_custom_call.1} parent=1 // pred_region
      %92 = dma.done [#allocation10], 1024
    $region49: #{tpu_custom_call.1} parent=1 // pred_fallthru
      _
    %v94 = vld [vmem:[#allocation3] sm:$0xf]
    %v95 = vld [vmem:[#allocation3 + $0x4] sm:$0xf]
    %v96 = vld [vmem:[#allocation3 + $0x8] sm:$0xf]
    %v97 = vld [vmem:[#allocation3 + $0xc] sm:$0xf]
    %v98 = vld [vmem:[#allocation3 + $0x10] sm:$0xf]
    %v99 = vld [vmem:[#allocation3 + $0x14] sm:$0xf]
    %v100 = vld [vmem:[#allocation3 + $0x18] sm:$0xf]
    %v101 = vld [vmem:[#allocation3 + $0x1c] sm:$0xf]
    %v102 = vld [vmem:[#allocation8] sm:$0xff]
    %v103 = vld [vmem:[#allocation8 + $0x8] sm:$0xff]
    %v104 = vld [vmem:[#allocation8 + $0x10] sm:$0xff]
    %v105 = vld [vmem:[#allocation8 + $0x18] sm:$0xff]
    %v106 = vld [vmem:[#allocation8 + $0x20] sm:$0xff]
    %v107 = vld [vmem:[#allocation8 + $0x28] sm:$0xff]
    %v108 = vld [vmem:[#allocation8 + $0x30] sm:$0xff]
    %v109 = vld [vmem:[#allocation8 + $0x38] sm:$0xff]
    %v110 = vld [vmem:[#allocation8 + $0x40] sm:$0xff]
    %v111 = vld [vmem:[#allocation8 + $0x48] sm:$0xff]
    %v112 = vld [vmem:[#allocation8 + $0x50] sm:$0xff]
    %v113 = vld [vmem:[#allocation8 + $0x58] sm:$0xff]
    %v114 = vld [vmem:[#allocation8 + $0x60] sm:$0xff]
    %v115 = vld [vmem:[#allocation8 + $0x68] sm:$0xff]
    %v116 = vld [vmem:[#allocation8 + $0x70] sm:$0xff]
    %v117 = vld [vmem:[#allocation8 + $0x78] sm:$0xff]
    %v118 = vld [vmem:[#allocation8 + $0x80] sm:$0xff]
    %v119 = vld [vmem:[#allocation8 + $0x88] sm:$0xff]
    %v120 = vld [vmem:[#allocation8 + $0x90] sm:$0xff]
    %v121 = vld [vmem:[#allocation8 + $0x98] sm:$0xff]
    %v122 = vld [vmem:[#allocation8 + $0xa0] sm:$0xff]
    %v123 = vld [vmem:[#allocation8 + $0xa8] sm:$0xff]
    %v124 = vld [vmem:[#allocation8 + $0xb0] sm:$0xff]
    %v125 = vld [vmem:[#allocation8 + $0xb8] sm:$0xff]
    %v126 = vld [vmem:[#allocation8 + $0xc0] sm:$0xff]
    %v127 = vld [vmem:[#allocation8 + $0xc8] sm:$0xff]
    %v128 = vld [vmem:[#allocation8 + $0xd0] sm:$0xff]
    %v129 = vld [vmem:[#allocation8 + $0xd8] sm:$0xff]
    %v130 = vld [vmem:[#allocation8 + $0xe0] sm:$0xff]
    %v131 = vld [vmem:[#allocation8 + $0xe8] sm:$0xff]
    %v132 = vld [vmem:[#allocation8 + $0xf0] sm:$0xff]
    %v133 = vld [vmem:[#allocation8 + $0xf8] sm:$0xff]
    %v134 = vld [vmem:[%s4] sm:$0xf]
    %v136 = vlaneseq
    %v137 = vshrl.u32 %v136, 7
    %v138 = vsub.s32 0, %v137
    %v139 = vrot.slane %v134, %v138
    %v140 = vlaneseq
    %v141 = vshrl.u32 %v140, 7
    %v142 = vsub.s32 1, %v141
    %v143 = vrot.slane %v134, %v142
    %v144 = vlaneseq
    %v145 = vshrl.u32 %v144, 7
    %v146 = vsub.s32 2, %v145
    %v147 = vrot.slane %v134, %v146
    %v148 = vlaneseq
    %v149 = vshrl.u32 %v148, 7
    %v150 = vsub.s32 3, %v149
    %v151 = vrot.slane %v134, %v150
    %v164 = vunpack.c.l.b16 %v94
    %v165 = vunpack.c.l.b16 %v95
    %v166 = vunpack.c.l.b16 %v96
    %v167 = vunpack.c.l.b16 %v97
    %v168 = vunpack.c.l.b16 %v98
    %v169 = vunpack.c.l.b16 %v99
    %v170 = vunpack.c.l.b16 %v100
    %v171 = vunpack.c.l.b16 %v101
    %v172 = vpack.c.b16 %v165, %v164
    %v173 = vpack.c.b16 %v167, %v166
    %v174 = vpack.c.b16 %v169, %v168
    %v175 = vpack.c.b16 %v171, %v170
    %v212 = vunpack.c.l.b16 %v102
    %v213 = vunpack.c.h.b16 %v102
    %v214 = vunpack.c.l.b16 %v103
    %v215 = vunpack.c.h.b16 %v103
    %v216 = vunpack.c.l.b16 %v104
    %v217 = vunpack.c.h.b16 %v104
    %v218 = vunpack.c.l.b16 %v105
    %v219 = vunpack.c.h.b16 %v105
    %v220 = vunpack.c.l.b16 %v106
    %v221 = vunpack.c.h.b16 %v106
    %v222 = vunpack.c.l.b16 %v107
    %v223 = vunpack.c.h.b16 %v107
    %v224 = vunpack.c.l.b16 %v108
    %v225 = vunpack.c.h.b16 %v108
    %v226 = vunpack.c.l.b16 %v109
    %v227 = vunpack.c.h.b16 %v109
    %v228 = vunpack.c.l.b16 %v110
    %v229 = vunpack.c.h.b16 %v110
    %v230 = vunpack.c.l.b16 %v111
    %v231 = vunpack.c.h.b16 %v111
    %v232 = vunpack.c.l.b16 %v112
    %v233 = vunpack.c.h.b16 %v112
    %v234 = vunpack.c.l.b16 %v113
    %v235 = vunpack.c.h.b16 %v113
    %v236 = vunpack.c.l.b16 %v114
    %v237 = vunpack.c.h.b16 %v114
    %v238 = vunpack.c.l.b16 %v115
    %v239 = vunpack.c.h.b16 %v115
    %v240 = vunpack.c.l.b16 %v116
    %v241 = vunpack.c.h.b16 %v116
    %v242 = vunpack.c.l.b16 %v117
    %v243 = vunpack.c.h.b16 %v117
    %v244 = vunpack.c.l.b16 %v118
    %v245 = vunpack.c.h.b16 %v118
    %v246 = vunpack.c.l.b16 %v119
    %v247 = vunpack.c.h.b16 %v119
    %v248 = vunpack.c.l.b16 %v120
    %v249 = vunpack.c.h.b16 %v120
    %v250 = vunpack.c.l.b16 %v121
    %v251 = vunpack.c.h.b16 %v121
    %v252 = vunpack.c.l.b16 %v122
    %v253 = vunpack.c.h.b16 %v122
    %v254 = vunpack.c.l.b16 %v123
    %v255 = vunpack.c.h.b16 %v123
    %v256 = vunpack.c.l.b16 %v124
    %v257 = vunpack.c.h.b16 %v124
    %v258 = vunpack.c.l.b16 %v125
    %v259 = vunpack.c.h.b16 %v125
    %v260 = vunpack.c.l.b16 %v126
    %v261 = vunpack.c.h.b16 %v126
    %v262 = vunpack.c.l.b16 %v127
    %v263 = vunpack.c.h.b16 %v127
    %v264 = vunpack.c.l.b16 %v128
    %v265 = vunpack.c.h.b16 %v128
    %v266 = vunpack.c.l.b16 %v129
    %v267 = vunpack.c.h.b16 %v129
    %v268 = vunpack.c.l.b16 %v130
    %v269 = vunpack.c.h.b16 %v130
    %v270 = vunpack.c.l.b16 %v131
    %v271 = vunpack.c.h.b16 %v131
    %v272 = vunpack.c.l.b16 %v132
    %v273 = vunpack.c.h.b16 %v132
    %v274 = vunpack.c.l.b16 %v133
    %v275 = vunpack.c.h.b16 %v133
    %v276 = vpack.c.b16 %v216, %v212
    %v277 = vpack.c.b16 %v217, %v213
    %v278 = vpack.c.b16 %v218, %v214
    %v279 = vpack.c.b16 %v219, %v215
    %v280 = vpack.c.b16 %v224, %v220
    %v281 = vpack.c.b16 %v225, %v221
    %v282 = vpack.c.b16 %v226, %v222
    %v283 = vpack.c.b16 %v227, %v223
    %v284 = vpack.c.b16 %v232, %v228
    %v285 = vpack.c.b16 %v233, %v229
    %v286 = vpack.c.b16 %v234, %v230
    %v287 = vpack.c.b16 %v235, %v231
    %v288 = vpack.c.b16 %v240, %v236
    %v289 = vpack.c.b16 %v241, %v237
    %v290 = vpack.c.b16 %v242, %v238
    %v291 = vpack.c.b16 %v243, %v239
    %v292 = vpack.c.b16 %v248, %v244
    %v293 = vpack.c.b16 %v249, %v245
    %v294 = vpack.c.b16 %v250, %v246
    %v295 = vpack.c.b16 %v251, %v247
    %v296 = vpack.c.b16 %v256, %v252
    %v297 = vpack.c.b16 %v257, %v253
    %v298 = vpack.c.b16 %v258, %v254
    %v299 = vpack.c.b16 %v259, %v255
    %v300 = vpack.c.b16 %v264, %v260
    %v301 = vpack.c.b16 %v265, %v261
    %v302 = vpack.c.b16 %v266, %v262
    %v303 = vpack.c.b16 %v267, %v263
    %v304 = vpack.c.b16 %v272, %v268
    %v305 = vpack.c.b16 %v273, %v269
    %v306 = vpack.c.b16 %v274, %v270
    %v307 = vpack.c.b16 %v275, %v271
    %340 = vmatprep.subr.bf16.mxu0 %v277
    %341 = vmatpush1.bf16.msra.mxu0 %v276
    %342 = vmatprep.subr.bf16.mxu0 %v281
    %343 = vmatpush1.bf16.msra.mxu0 %v280
    %344 = vmatprep.subr.bf16.mxu0 %v285
    %345 = vmatpush1.bf16.msra.mxu0 %v284
    %346 = vmatprep.subr.bf16.mxu0 %v289
    %347 = vmatpush1.bf16.msra.mxu0 %v288
    %348 = vmatprep.subr.bf16.mxu0 %v293
    %349 = vmatpush1.bf16.msra.mxu0 %v292
    %350 = vmatprep.subr.bf16.mxu0 %v297
    %351 = vmatpush1.bf16.msra.mxu0 %v296
    %352 = vmatprep.subr.bf16.mxu0 %v301
    %353 = vmatpush1.bf16.msra.mxu0 %v300
    %354 = vmatprep.subr.bf16.mxu0 %v305
    %355 = vmatpush1.bf16.msra.mxu0 %v304
    %356 = vmatprep.subr.bf16.mxu0 0
    %357 = vmatpush1.bf16.msra.mxu0 0
    %358 = vmatprep.subr.bf16.mxu0 0
    %359 = vmatpush1.bf16.msra.mxu0 0
    %360 = vmatprep.subr.bf16.mxu0 0
    %361 = vmatpush1.bf16.msra.mxu0 0
    %362 = vmatprep.subr.bf16.mxu0 0
    %363 = vmatpush1.bf16.msra.mxu0 0
    %364 = vmatprep.subr.bf16.mxu0 0
    %365 = vmatpush1.bf16.msra.mxu0 0
    %366 = vmatprep.subr.bf16.mxu0 0
    %367 = vmatpush1.bf16.msra.mxu0 0
    %368 = vmatprep.subr.bf16.mxu0 0
    %369 = vmatpush1.bf16.msra.mxu0 0
    %370 = vmatprep.subr.bf16.mxu0 0
    %371 = vmatpush1.bf16.msra.mxu0 0
    %372 = vmatprep.mubr.bf16.mxu0 0
    %373 = vmatmul.mubr.bf16.gmra.mrb[0].mxu0 %v172
    %v374 = vpop.f32.mrb[0].mxu0
    %v375 = vadd.f32 %v139, %v374
    %v376 = vpop.f32.mrb[0].mxu0
    %v377 = vadd.f32 %v143, %v376
    %v378 = vpop.f32.mrb[0].mxu0
    %v379 = vadd.f32 %v139, %v378
    %v380 = vpop.f32.mrb[0].mxu0
    %v381 = vadd.f32 %v143, %v380
    %382 = vmatprep.mubr.bf16.mxu0 0
    %383 = vmatmul.mubr.bf16.gmra.mrb[0].mxu0 %v173
    %v384 = vpop.f32.mrb[0].mxu0
    %v385 = vadd.f32 %v139, %v384
    %v386 = vpop.f32.mrb[0].mxu0
    %v387 = vadd.f32 %v143, %v386
    %v388 = vpop.f32.mrb[0].mxu0
    %v389 = vadd.f32 %v139, %v388
    %v390 = vpop.f32.mrb[0].mxu0
    %v391 = vadd.f32 %v143, %v390
    %392 = vmatprep.mubr.bf16.mxu0 0
    %393 = vmatmul.mubr.bf16.gmra.mrb[0].mxu0 %v174
    %v394 = vpop.f32.mrb[0].mxu0
    %v395 = vadd.f32 %v139, %v394
    %v396 = vpop.f32.mrb[0].mxu0
    %v397 = vadd.f32 %v143, %v396
    %v398 = vpop.f32.mrb[0].mxu0
    %v399 = vadd.f32 %v139, %v398
    %v400 = vpop.f32.mrb[0].mxu0
    %v401 = vadd.f32 %v143, %v400
    %402 = vmatprep.mubr.bf16.mxu0 0
    %403 = vmatmul.mubr.bf16.gmra.mrb[0].mxu0 %v175
    %v404 = vpop.f32.mrb[0].mxu0
    %v405 = vadd.f32 %v139, %v404
    %v406 = vpop.f32.mrb[0].mxu0
    %v407 = vadd.f32 %v143, %v406
    %v408 = vpop.f32.mrb[0].mxu0
    %v409 = vadd.f32 %v139, %v408
    %v410 = vpop.f32.mrb[0].mxu0
    %v411 = vadd.f32 %v143, %v410
    %412 = vdwg.mxu0
    %413 = vmatprep.subr.bf16.mxu0 %v279
    %414 = vmatpush1.bf16.msra.mxu0 %v278
    %415 = vmatprep.subr.bf16.mxu0 %v283
    %416 = vmatpush1.bf16.msra.mxu0 %v282
    %417 = vmatprep.subr.bf16.mxu0 %v287
    %418 = vmatpush1.bf16.msra.mxu0 %v286
    %419 = vmatprep.subr.bf16.mxu0 %v291
    %420 = vmatpush1.bf16.msra.mxu0 %v290
    %421 = vmatprep.subr.bf16.mxu0 %v295
    %422 = vmatpush1.bf16.msra.mxu0 %v294
    %423 = vmatprep.subr.bf16.mxu0 %v299
    %424 = vmatpush1.bf16.msra.mxu0 %v298
    %425 = vmatprep.subr.bf16.mxu0 %v303
    %426 = vmatpush1.bf16.msra.mxu0 %v302
    %427 = vmatprep.subr.bf16.mxu0 %v307
    %428 = vmatpush1.bf16.msra.mxu0 %v306
    %429 = vmatprep.subr.bf16.mxu0 0
    %430 = vmatpush1.bf16.msra.mxu0 0
    %431 = vmatprep.subr.bf16.mxu0 0
    %432 = vmatpush1.bf16.msra.mxu0 0
    %433 = vmatprep.subr.bf16.mxu0 0
    %434 = vmatpush1.bf16.msra.mxu0 0
    %435 = vmatprep.subr.bf16.mxu0 0
    %436 = vmatpush1.bf16.msra.mxu0 0
    %437 = vmatprep.subr.bf16.mxu0 0
    %438 = vmatpush1.bf16.msra.mxu0 0
    %439 = vmatprep.subr.bf16.mxu0 0
    %440 = vmatpush1.bf16.msra.mxu0 0
    %441 = vmatprep.subr.bf16.mxu0 0
    %442 = vmatpush1.bf16.msra.mxu0 0
    %443 = vmatprep.subr.bf16.mxu0 0
    %444 = vmatpush1.bf16.msra.mxu0 0
    %445 = vmatprep.mubr.bf16.mxu0 0
    %446 = vmatmul.mubr.bf16.gmra.mrb[0].mxu0 %v172
    %v447 = vpop.f32.mrb[0].mxu0
    %v448 = vadd.f32 %v147, %v447
    %v449 = vpop.f32.mrb[0].mxu0
    %v450 = vadd.f32 %v151, %v449
    %v451 = vpop.f32.mrb[0].mxu0
    %v452 = vadd.f32 %v147, %v451
    %v453 = vpop.f32.mrb[0].mxu0
    %v454 = vadd.f32 %v151, %v453
    %455 = vmatprep.mubr.bf16.mxu0 0
    %456 = vmatmul.mubr.bf16.gmra.mrb[0].mxu0 %v173
    %v457 = vpop.f32.mrb[0].mxu0
    %v458 = vadd.f32 %v147, %v457
    %v459 = vpop.f32.mrb[0].mxu0
    %v460 = vadd.f32 %v151, %v459
    %v461 = vpop.f32.mrb[0].mxu0
    %v462 = vadd.f32 %v147, %v461
    %v463 = vpop.f32.mrb[0].mxu0
    %v464 = vadd.f32 %v151, %v463
    %465 = vmatprep.mubr.bf16.mxu0 0
    %466 = vmatmul.mubr.bf16.gmra.mrb[0].mxu0 %v174
    %v467 = vpop.f32.mrb[0].mxu0
    %v468 = vadd.f32 %v147, %v467
    %v469 = vpop.f32.mrb[0].mxu0
    %v470 = vadd.f32 %v151, %v469
    %v471 = vpop.f32.mrb[0].mxu0
    %v472 = vadd.f32 %v147, %v471
    %v473 = vpop.f32.mrb[0].mxu0
    %v474 = vadd.f32 %v151, %v473
    %475 = vmatprep.mubr.bf16.mxu0 0
    %476 = vmatmul.mubr.bf16.gmra.mrb[0].mxu0 %v175
    %v477 = vpop.f32.mrb[0].mxu0
    %v478 = vadd.f32 %v147, %v477
    %v479 = vpop.f32.mrb[0].mxu0
    %v480 = vadd.f32 %v151, %v479
    %v481 = vpop.f32.mrb[0].mxu0
    %v482 = vadd.f32 %v147, %v481
    %v483 = vpop.f32.mrb[0].mxu0
    %v484 = vadd.f32 %v151, %v483
    %485 = vdwg.mxu0
    %486 = vst [vmem:[#allocation2] sm:$0xff] %v375
    %487 = vst [vmem:[#allocation2 + $0x8] sm:$0xff] %v377
    %488 = vst [vmem:[#allocation2 + $0x10] sm:$0xff] %v448
    %489 = vst [vmem:[#allocation2 + $0x18] sm:$0xff] %v450
    %490 = vst [vmem:[#allocation2 + $0x20] sm:$0xff] %v379
    %491 = vst [vmem:[#allocation2 + $0x28] sm:$0xff] %v381
    %492 = vst [vmem:[#allocation2 + $0x30] sm:$0xff] %v452
    %493 = vst [vmem:[#allocation2 + $0x38] sm:$0xff] %v454
    %494 = vst [vmem:[#allocation2 + $0x40] sm:$0xff] %v385
    %495 = vst [vmem:[#allocation2 + $0x48] sm:$0xff] %v387
    %496 = vst [vmem:[#allocation2 + $0x50] sm:$0xff] %v458
    %497 = vst [vmem:[#allocation2 + $0x58] sm:$0xff] %v460
    %498 = vst [vmem:[#allocation2 + $0x60] sm:$0xff] %v389
    %499 = vst [vmem:[#allocation2 + $0x68] sm:$0xff] %v391
    %500 = vst [vmem:[#allocation2 + $0x70] sm:$0xff] %v462
    %501 = vst [vmem:[#allocation2 + $0x78] sm:$0xff] %v464
    %502 = vst [vmem:[#allocation2 + $0x80] sm:$0xff] %v395
    %503 = vst [vmem:[#allocation2 + $0x88] sm:$0xff] %v397
    %504 = vst [vmem:[#allocation2 + $0x90] sm:$0xff] %v468
    %505 = vst [vmem:[#allocation2 + $0x98] sm:$0xff] %v470
    %506 = vst [vmem:[#allocation2 + $0xa0] sm:$0xff] %v399
    %507 = vst [vmem:[#allocation2 + $0xa8] sm:$0xff] %v401
    %508 = vst [vmem:[#allocation2 + $0xb0] sm:$0xff] %v472
    %509 = vst [vmem:[#allocation2 + $0xb8] sm:$0xff] %v474
    %510 = vst [vmem:[#allocation2 + $0xc0] sm:$0xff] %v405
    %511 = vst [vmem:[#allocation2 + $0xc8] sm:$0xff] %v407
    %512 = vst [vmem:[#allocation2 + $0xd0] sm:$0xff] %v478
    %513 = vst [vmem:[#allocation2 + $0xd8] sm:$0xff] %v480
    %514 = vst [vmem:[#allocation2 + $0xe0] sm:$0xff] %v409
    %515 = vst [vmem:[#allocation2 + $0xe8] sm:$0xff] %v411
    %516 = vst [vmem:[#allocation2 + $0xf0] sm:$0xff] %v482
    %517 = vst [vmem:[#allocation2 + $0xf8] sm:$0xff] %v484
    %v518 = vld [vmem:[#allocation6] sm:$0xff]
    %v519 = vld [vmem:[#allocation2] sm:$0xff]
    %v520 = vld [vmem:[#allocation2 + $0x8] sm:$0xff]
    %v521 = vld [vmem:[#allocation2 + $0x10] sm:$0xff]
    %v522 = vld [vmem:[#allocation2 + $0x18] sm:$0xff]
    %v523 = vld [vmem:[#allocation9] sm:$0xff]
    %v524 = vld [vmem:[#allocation9 + $0x8] sm:$0xff]
    %v525 = vld [vmem:[#allocation9 + $0x10] sm:$0xff]
    %v526 = vld [vmem:[#allocation9 + $0x18] sm:$0xff]
    %v527 = vld [vmem:[#allocation9 + $0x20] sm:$0xff]
    %v528 = vld [vmem:[#allocation9 + $0x28] sm:$0xff]
    %v529 = vld [vmem:[#allocation9 + $0x30] sm:$0xff]
    %v530 = vld [vmem:[#allocation9 + $0x38] sm:$0xff]
    %v531 = vld [vmem:[#allocation9 + $0x40] sm:$0xff]
    %v532 = vld [vmem:[#allocation9 + $0x48] sm:$0xff]
    %v533 = vld [vmem:[#allocation9 + $0x50] sm:$0xff]
    %v534 = vld [vmem:[#allocation9 + $0x58] sm:$0xff]
    %v535 = vld [vmem:[#allocation9 + $0x60] sm:$0xff]
    %v536 = vld [vmem:[#allocation9 + $0x68] sm:$0xff]
    %v537 = vld [vmem:[#allocation9 + $0x70] sm:$0xff]
    %v538 = vld [vmem:[#allocation9 + $0x78] sm:$0xff]
    %v539 = vld [vmem:[#allocation9 + $0x80] sm:$0xff]
    %v540 = vld [vmem:[#allocation9 + $0x88] sm:$0xff]
    %v541 = vld [vmem:[#allocation9 + $0x90] sm:$0xff]
    %v542 = vld [vmem:[#allocation9 + $0x98] sm:$0xff]
    %v543 = vld [vmem:[#allocation9 + $0xa0] sm:$0xff]
    %v544 = vld [vmem:[#allocation9 + $0xa8] sm:$0xff]
    %v545 = vld [vmem:[#allocation9 + $0xb0] sm:$0xff]
    %v546 = vld [vmem:[#allocation9 + $0xb8] sm:$0xff]
    %v547 = vld [vmem:[#allocation9 + $0xc0] sm:$0xff]
    %v548 = vld [vmem:[#allocation9 + $0xc8] sm:$0xff]
    %v549 = vld [vmem:[#allocation9 + $0xd0] sm:$0xff]
    %v550 = vld [vmem:[#allocation9 + $0xd8] sm:$0xff]
    %v551 = vld [vmem:[#allocation9 + $0xe0] sm:$0xff]
    %v552 = vld [vmem:[#allocation9 + $0xe8] sm:$0xff]
    %v553 = vld [vmem:[#allocation9 + $0xf0] sm:$0xff]
    %v554 = vld [vmem:[#allocation9 + $0xf8] sm:$0xff]
    %v587 = vunpack.c.l.b16 %v523
    %v588 = vunpack.c.h.b16 %v523
    %v589 = vunpack.c.l.b16 %v524
    %v590 = vunpack.c.h.b16 %v524
    %v591 = vunpack.c.l.b16 %v525
    %v592 = vunpack.c.h.b16 %v525
    %v593 = vunpack.c.l.b16 %v526
    %v594 = vunpack.c.h.b16 %v526
    %v595 = vunpack.c.l.b16 %v527
    %v596 = vunpack.c.h.b16 %v527
    %v597 = vunpack.c.l.b16 %v528
    %v598 = vunpack.c.h.b16 %v528
    %v599 = vunpack.c.l.b16 %v529
    %v600 = vunpack.c.h.b16 %v529
    %v601 = vunpack.c.l.b16 %v530
    %v602 = vunpack.c.h.b16 %v530
    %v603 = vunpack.c.l.b16 %v531
    %v604 = vunpack.c.h.b16 %v531
    %v605 = vunpack.c.l.b16 %v532
    %v606 = vunpack.c.h.b16 %v532
    %v607 = vunpack.c.l.b16 %v533
    %v608 = vunpack.c.h.b16 %v533
    %v609 = vunpack.c.l.b16 %v534
    %v610 = vunpack.c.h.b16 %v534
    %v611 = vunpack.c.l.b16 %v535
    %v612 = vunpack.c.h.b16 %v535
    %v613 = vunpack.c.l.b16 %v536
    %v614 = vunpack.c.h.b16 %v536
    %v615 = vunpack.c.l.b16 %v537
    %v616 = vunpack.c.h.b16 %v537
    %v617 = vunpack.c.l.b16 %v538
    %v618 = vunpack.c.h.b16 %v538
    %v619 = vunpack.c.l.b16 %v539
    %v620 = vunpack.c.h.b16 %v539
    %v621 = vunpack.c.l.b16 %v540
    %v622 = vunpack.c.h.b16 %v540
    %v623 = vunpack.c.l.b16 %v541
    %v624 = vunpack.c.h.b16 %v541
    %v625 = vunpack.c.l.b16 %v542
    %v626 = vunpack.c.h.b16 %v542
    %v627 = vunpack.c.l.b16 %v543
    %v628 = vunpack.c.h.b16 %v543
    %v629 = vunpack.c.l.b16 %v544
    %v630 = vunpack.c.h.b16 %v544
    %v631 = vunpack.c.l.b16 %v545
    %v632 = vunpack.c.h.b16 %v545
    %v633 = vunpack.c.l.b16 %v546
    %v634 = vunpack.c.h.b16 %v546
    %v635 = vunpack.c.l.b16 %v547
    %v636 = vunpack.c.h.b16 %v547
    %v637 = vunpack.c.l.b16 %v548
    %v638 = vunpack.c.h.b16 %v548
    %v639 = vunpack.c.l.b16 %v549
    %v640 = vunpack.c.h.b16 %v549
    %v641 = vunpack.c.l.b16 %v550
    %v642 = vunpack.c.h.b16 %v550
    %v643 = vunpack.c.l.b16 %v551
    %v644 = vunpack.c.h.b16 %v551
    %v645 = vunpack.c.l.b16 %v552
    %v646 = vunpack.c.h.b16 %v552
    %v647 = vunpack.c.l.b16 %v553
    %v648 = vunpack.c.h.b16 %v553
    %v649 = vunpack.c.l.b16 %v554
    %v650 = vunpack.c.h.b16 %v554
    %v651 = vpack.c.b16 %v591, %v587
    %v652 = vpack.c.b16 %v592, %v588
    %v653 = vpack.c.b16 %v593, %v589
    %v654 = vpack.c.b16 %v594, %v590
    %v655 = vpack.c.b16 %v599, %v595
    %v656 = vpack.c.b16 %v600, %v596
    %v657 = vpack.c.b16 %v601, %v597
    %v658 = vpack.c.b16 %v602, %v598
    %v659 = vpack.c.b16 %v607, %v603
    %v660 = vpack.c.b16 %v608, %v604
    %v661 = vpack.c.b16 %v609, %v605
    %v662 = vpack.c.b16 %v610, %v606
    %v663 = vpack.c.b16 %v615, %v611
    %v664 = vpack.c.b16 %v616, %v612
    %v665 = vpack.c.b16 %v617, %v613
    %v666 = vpack.c.b16 %v618, %v614
    %v667 = vpack.c.b16 %v623, %v619
    %v668 = vpack.c.b16 %v624, %v620
    %v669 = vpack.c.b16 %v625, %v621
    %v670 = vpack.c.b16 %v626, %v622
    %v671 = vpack.c.b16 %v631, %v627
    %v672 = vpack.c.b16 %v632, %v628
    %v673 = vpack.c.b16 %v633, %v629
    %v674 = vpack.c.b16 %v634, %v630
    %v675 = vpack.c.b16 %v639, %v635
    %v676 = vpack.c.b16 %v640, %v636
    %v677 = vpack.c.b16 %v641, %v637
    %v678 = vpack.c.b16 %v642, %v638
    %v679 = vpack.c.b16 %v647, %v643
    %v680 = vpack.c.b16 %v648, %v644
    %v681 = vpack.c.b16 %v649, %v645
    %v682 = vpack.c.b16 %v650, %v646
    %715 = vmatprep.subr.bf16.mxu0 %v652
    %716 = vmatpush1.bf16.msra.mxu0 %v651
    %717 = vmatprep.subr.bf16.mxu0 %v656
    %718 = vmatpush1.bf16.msra.mxu0 %v655
    %719 = vmatprep.subr.bf16.mxu0 %v660
    %720 = vmatpush1.bf16.msra.mxu0 %v659
    %721 = vmatprep.subr.bf16.mxu0 %v664
    %722 = vmatpush1.bf16.msra.mxu0 %v663
    %723 = vmatprep.subr.bf16.mxu0 %v668
    %724 = vmatpush1.bf16.msra.mxu0 %v667
    %725 = vmatprep.subr.bf16.mxu0 %v672
    %726 = vmatpush1.bf16.msra.mxu0 %v671
    %727 = vmatprep.subr.bf16.mxu0 %v676
    %728 = vmatpush1.bf16.msra.mxu0 %v675
    %729 = vmatprep.subr.bf16.mxu0 %v680
    %730 = vmatpush1.bf16.msra.mxu0 %v679
    %731 = vmatprep.subr.bf16.mxu0 0
    %732 = vmatpush1.bf16.msra.mxu0 0
    %733 = vmatprep.subr.bf16.mxu0 0
    %734 = vmatpush1.bf16.msra.mxu0 0
    %735 = vmatprep.subr.bf16.mxu0 0
    %736 = vmatpush1.bf16.msra.mxu0 0
    %737 = vmatprep.subr.bf16.mxu0 0
    %738 = vmatpush1.bf16.msra.mxu0 0
    %739 = vmatprep.subr.bf16.mxu0 0
    %740 = vmatpush1.bf16.msra.mxu0 0
    %741 = vmatprep.subr.bf16.mxu0 0
    %742 = vmatpush1.bf16.msra.mxu0 0
    %743 = vmatprep.subr.bf16.mxu0 0
    %744 = vmatpush1.bf16.msra.mxu0 0
    %745 = vmatprep.subr.bf16.mxu0 0
    %746 = vmatpush1.bf16.msra.mxu0 0
    %747 = vmatprep.mubr.bf16.mxu0 0
    %748 = vmatmul.mubr.bf16.gmra.mrb[0].mxu0 0
    %v749 = vpop.f32.mrb[0].mxu0
    %v750 = vadd.f32 0.0, %v749
    %v751 = vpop.f32.mrb[0].mxu0
    %v752 = vadd.f32 0.0, %v751
    %v753 = vpop.f32.mrb[0].mxu0
    %v754 = vpop.f32.mrb[0].mxu0
    %755 = vdwg.mxu0
    %756 = vmatprep.subr.bf16.mxu0 %v654
    %757 = vmatpush1.bf16.msra.mxu0 %v653
    %758 = vmatprep.subr.bf16.mxu0 %v658
    %759 = vmatpush1.bf16.msra.mxu0 %v657
    %760 = vmatprep.subr.bf16.mxu0 %v662
    %761 = vmatpush1.bf16.msra.mxu0 %v661
    %762 = vmatprep.subr.bf16.mxu0 %v666
    %763 = vmatpush1.bf16.msra.mxu0 %v665
    %764 = vmatprep.subr.bf16.mxu0 %v670
    %765 = vmatpush1.bf16.msra.mxu0 %v669
    %766 = vmatprep.subr.bf16.mxu0 %v674
    %767 = vmatpush1.bf16.msra.mxu0 %v673
    %768 = vmatprep.subr.bf16.mxu0 %v678
    %769 = vmatpush1.bf16.msra.mxu0 %v677
    %770 = vmatprep.subr.bf16.mxu0 %v682
    %771 = vmatpush1.bf16.msra.mxu0 %v681
    %772 = vmatprep.subr.bf16.mxu0 0
    %773 = vmatpush1.bf16.msra.mxu0 0
    %774 = vmatprep.subr.bf16.mxu0 0
    %775 = vmatpush1.bf16.msra.mxu0 0
    %776 = vmatprep.subr.bf16.mxu0 0
    %777 = vmatpush1.bf16.msra.mxu0 0
    %778 = vmatprep.subr.bf16.mxu0 0
    %779 = vmatpush1.bf16.msra.mxu0 0
    %780 = vmatprep.subr.bf16.mxu0 0
    %781 = vmatpush1.bf16.msra.mxu0 0
    %782 = vmatprep.subr.bf16.mxu0 0
    %783 = vmatpush1.bf16.msra.mxu0 0
    %784 = vmatprep.subr.bf16.mxu0 0
    %785 = vmatpush1.bf16.msra.mxu0 0
    %786 = vmatprep.subr.bf16.mxu0 0
    %787 = vmatpush1.bf16.msra.mxu0 0
    %788 = vmatprep.mubr.bf16.mxu0 0
    %789 = vmatmul.mubr.bf16.gmra.mrb[0].mxu0 0
    %v790 = vpop.f32.mrb[0].mxu0
    %v791 = vadd.f32 0.0, %v790
    %v792 = vpop.f32.mrb[0].mxu0
    %v793 = vadd.f32 0.0, %v792
    %v794 = vpop.f32.mrb[0].mxu0
    %v795 = vpop.f32.mrb[0].mxu0
    %796 = vdwg.mxu0
    %v797 = vadd.f32 %v519, %v750
    %v798 = vadd.f32 %v520, %v752
    %v799 = vadd.f32 %v521, %v791
    %v800 = vadd.f32 %v522, %v793
    %v801 = vxor.u32 %v797, 2147483648
    %v802 = vxor.u32 %v798, 2147483648
    %v803 = vxor.u32 %v799, 2147483648
    %v804 = vmul.f32 %v801, 1.442695
    %v805 = vpow.pop %v804
    %v806 = vmul.f32 %v802, 1.442695
    %v807 = vpow.pop %v806
    %v808 = vmul.f32 %v803, 1.442695
    %v809 = vpow.pop %v808
    %v810 = vadd.f32 %v805, 1.0
    %v811 = vadd.f32 %v807, 1.0
    %v812 = vadd.f32 %v809, 1.0
    %v813 = vrcp.pop %v810
    %v814 = vmul.f32 1.0, %v813
    %v815 = vrcp.pop %v811
    %v816 = vmul.f32 1.0, %v815
    %v817 = vrcp.pop %v812
    %v818 = vmul.f32 1.0, %v817
    %v819 = vtanh.pop %v800
    %v820 = vmul.f32 %v816, 0.0
    %v821 = vmul.f32 %v814, %v819
    %v822 = vadd.f32 %v820, %v821
    %v823 = vtanh.pop %v822
    %v824 = vmul.f32 %v818, %v823
    %vm825 = vcmp.gt.s32.totalorder %v518, 0
    %v826 = vsel %vm825, %v824, 0.0
    %v827 = vld [vmem:[#allocation2 + $0x20] sm:$0xff]
    %v828 = vld [vmem:[#allocation2 + $0x28] sm:$0xff]
    %v829 = vld [vmem:[#allocation2 + $0x30] sm:$0xff]
    %v830 = vld [vmem:[#allocation2 + $0x38] sm:$0xff]
    %v831 = vpack.c.bf16 %v826, %v826
    %832 = vmatprep.subr.bf16.mxu0 %v652
    %833 = vmatpush1.bf16.msra.mxu0 %v651
    %834 = vmatprep.subr.bf16.mxu0 %v656
    %835 = vmatpush1.bf16.msra.mxu0 %v655
    %836 = vmatprep.subr.bf16.mxu0 %v660
    %837 = vmatpush1.bf16.msra.mxu0 %v659
    %838 = vmatprep.subr.bf16.mxu0 %v664
    %839 = vmatpush1.bf16.msra.mxu0 %v663
    %840 = vmatprep.subr.bf16.mxu0 %v668
    %841 = vmatpush1.bf16.msra.mxu0 %v667
    %842 = vmatprep.subr.bf16.mxu0 %v672
    %843 = vmatpush1.bf16.msra.mxu0 %v671
    %844 = vmatprep.subr.bf16.mxu0 %v676
    %845 = vmatpush1.bf16.msra.mxu0 %v675
    %846 = vmatprep.subr.bf16.mxu0 %v680
    %847 = vmatpush1.bf16.msra.mxu0 %v679
    %848 = vmatprep.subr.bf16.mxu0 0
    %849 = vmatpush1.bf16.msra.mxu0 0
    %850 = vmatprep.subr.bf16.mxu0 0
    %851 = vmatpush1.bf16.msra.mxu0 0
    %852 = vmatprep.subr.bf16.mxu0 0
    %853 = vmatpush1.bf16.msra.mxu0 0
    %854 = vmatprep.subr.bf16.mxu0 0
    %855 = vmatpush1.bf16.msra.mxu0 0
    %856 = vmatprep.subr.bf16.mxu0 0
    %857 = vmatpush1.bf16.msra.mxu0 0
    %858 = vmatprep.subr.bf16.mxu0 0
    %859 = vmatpush1.bf16.msra.mxu0 0
    %860 = vmatprep.subr.bf16.mxu0 0
    %861 = vmatpush1.bf16.msra.mxu0 0
    %862 = vmatprep.subr.bf16.mxu0 0
    %863 = vmatpush1.bf16.msra.mxu0 0
    %864 = vmatprep.mubr.bf16.mxu0 0
    %865 = vmatmul.mubr.bf16.gmra.mrb[0].mxu0 %v831
    %v866 = vpop.f32.mrb[0].mxu0
    %v867 = vadd.f32 0.0, %v866
    %v868 = vpop.f32.mrb[0].mxu0
    %v869 = vadd.f32 0.0, %v868
    %v870 = vpop.f32.mrb[0].mxu0
    %v871 = vpop.f32.mrb[0].mxu0
    %872 = vdwg.mxu0
    %873 = vmatprep.subr.bf16.mxu0 %v654
    %874 = vmatpush1.bf16.msra.mxu0 %v653
    %875 = vmatprep.subr.bf16.mxu0 %v658
    %876 = vmatpush1.bf16.msra.mxu0 %v657
    %877 = vmatprep.subr.bf16.mxu0 %v662
    %878 = vmatpush1.bf16.msra.mxu0 %v661
    %879 = vmatprep.subr.bf16.mxu0 %v666
    %880 = vmatpush1.bf16.msra.mxu0 %v665
    %881 = vmatprep.subr.bf16.mxu0 %v670
    %882 = vmatpush1.bf16.msra.mxu0 %v669
    %883 = vmatprep.subr.bf16.mxu0 %v674
    %884 = vmatpush1.bf16.msra.mxu0 %v673
    %885 = vmatprep.subr.bf16.mxu0 %v678
    %886 = vmatpush1.bf16.msra.mxu0 %v677
    %887 = vmatprep.subr.bf16.mxu0 %v682
    %888 = vmatpush1.bf16.msra.mxu0 %v681
    %889 = vmatprep.subr.bf16.mxu0 0
    %890 = vmatpush1.bf16.msra.mxu0 0
    %891 = vmatprep.subr.bf16.mxu0 0
    %892 = vmatpush1.bf16.msra.mxu0 0
    %893 = vmatprep.subr.bf16.mxu0 0
    %894 = vmatpush1.bf16.msra.mxu0 0
    %895 = vmatprep.subr.bf16.mxu0 0
    %896 = vmatpush1.bf16.msra.mxu0 0
    %897 = vmatprep.subr.bf16.mxu0 0
    %898 = vmatpush1.bf16.msra.mxu0 0
    %899 = vmatprep.subr.bf16.mxu0 0
    %900 = vmatpush1.bf16.msra.mxu0 0
    %901 = vmatprep.subr.bf16.mxu0 0
    %902 = vmatpush1.bf16.msra.mxu0 0
    %903 = vmatprep.subr.bf16.mxu0 0
    %904 = vmatpush1.bf16.msra.mxu0 0
    %905 = vmatprep.mubr.bf16.mxu0 0
    %906 = vmatmul.mubr.bf16.gmra.mrb[0].mxu0 %v831
    %v907 = vpop.f32.mrb[0].mxu0
    %v908 = vadd.f32 0.0, %v907
    %v909 = vpop.f32.mrb[0].mxu0
    %v910 = vadd.f32 0.0, %v909
    %v911 = vpop.f32.mrb[0].mxu0
    %v912 = vpop.f32.mrb[0].mxu0
    %913 = vdwg.mxu0
    %v914 = vadd.f32 %v827, %v867
    %v915 = vadd.f32 %v828, %v869
    %v916 = vadd.f32 %v829, %v908
    %v917 = vadd.f32 %v830, %v910
    %v918 = vxor.u32 %v914, 2147483648
    %v919 = vxor.u32 %v915, 2147483648
    %v920 = vxor.u32 %v916, 2147483648
    %v921 = vmul.f32 %v918, 1.442695
    %v922 = vpow.pop %v921
    %v923 = vmul.f32 %v919, 1.442695
    %v924 = vpow.pop %v923
    %v925 = vmul.f32 %v920, 1.442695
    %v926 = vpow.pop %v925
    %v927 = vadd.f32 %v922, 1.0
    %v928 = vadd.f32 %v924, 1.0
    %v929 = vadd.f32 %v926, 1.0
    %v930 = vrcp.pop %v927
    %v931 = vmul.f32 1.0, %v930
    %v932 = vrcp.pop %v928
    %v933 = vmul.f32 1.0, %v932
    %v934 = vrcp.pop %v929
    %v935 = vmul.f32 1.0, %v934
    %v936 = vtanh.pop %v917
    %v937 = vmul.f32 %v933, %v822
    %v938 = vmul.f32 %v931, %v936
    %v939 = vadd.f32 %v937, %v938
    %v940 = vtanh.pop %v939
    %v941 = vmul.f32 %v935, %v940
    %vm942 = vcmp.gt.s32.totalorder %v518, 1
    %v943 = vsel %vm942, %v941, %v826
    %v944 = vld [vmem:[#allocation2 + $0x40] sm:$0xff]
    %v945 = vld [vmem:[#allocation2 + $0x48] sm:$0xff]
    %v946 = vld [vmem:[#allocation2 + $0x50] sm:$0xff]
    %v947 = vld [vmem:[#allocation2 + $0x58] sm:$0xff]
    %v948 = vpack.c.bf16 %v943, %v943
    %949 = vmatprep.subr.bf16.mxu0 %v652
    %950 = vmatpush1.bf16.msra.mxu0 %v651
    %951 = vmatprep.subr.bf16.mxu0 %v656
    %952 = vmatpush1.bf16.msra.mxu0 %v655
    %953 = vmatprep.subr.bf16.mxu0 %v660
    %954 = vmatpush1.bf16.msra.mxu0 %v659
    %955 = vmatprep.subr.bf16.mxu0 %v664
    %956 = vmatpush1.bf16.msra.mxu0 %v663
    %957 = vmatprep.subr.bf16.mxu0 %v668
    %958 = vmatpush1.bf16.msra.mxu0 %v667
    %959 = vmatprep.subr.bf16.mxu0 %v672
    %960 = vmatpush1.bf16.msra.mxu0 %v671
    %961 = vmatprep.subr.bf16.mxu0 %v676
    %962 = vmatpush1.bf16.msra.mxu0 %v675
    %963 = vmatprep.subr.bf16.mxu0 %v680
    %964 = vmatpush1.bf16.msra.mxu0 %v679
    %965 = vmatprep.subr.bf16.mxu0 0
    %966 = vmatpush1.bf16.msra.mxu0 0
    %967 = vmatprep.subr.bf16.mxu0 0
    %968 = vmatpush1.bf16.msra.mxu0 0
    %969 = vmatprep.subr.bf16.mxu0 0
    %970 = vmatpush1.bf16.msra.mxu0 0
    %971 = vmatprep.subr.bf16.mxu0 0
    %972 = vmatpush1.bf16.msra.mxu0 0
    %973 = vmatprep.subr.bf16.mxu0 0
    %974 = vmatpush1.bf16.msra.mxu0 0
    %975 = vmatprep.subr.bf16.mxu0 0
    %976 = vmatpush1.bf16.msra.mxu0 0
    %977 = vmatprep.subr.bf16.mxu0 0
    %978 = vmatpush1.bf16.msra.mxu0 0
    %979 = vmatprep.subr.bf16.mxu0 0
    %980 = vmatpush1.bf16.msra.mxu0 0
    %981 = vmatprep.mubr.bf16.mxu0 0
    %982 = vmatmul.mubr.bf16.gmra.mrb[0].mxu0 %v948
    %v983 = vpop.f32.mrb[0].mxu0
    %v984 = vadd.f32 0.0, %v983
    %v985 = vpop.f32.mrb[0].mxu0
    %v986 = vadd.f32 0.0, %v985
    %v987 = vpop.f32.mrb[0].mxu0
    %v988 = vpop.f32.mrb[0].mxu0
    %989 = vdwg.mxu0
    %990 = vmatprep.subr.bf16.mxu0 %v654
    %991 = vmatpush1.bf16.msra.mxu0 %v653
    %992 = vmatprep.subr.bf16.mxu0 %v658
    %993 = vmatpush1.bf16.msra.mxu0 %v657
    %994 = vmatprep.subr.bf16.mxu0 %v662
    %995 = vmatpush1.bf16.msra.mxu0 %v661
    %996 = vmatprep.subr.bf16.mxu0 %v666
    %997 = vmatpush1.bf16.msra.mxu0 %v665
    %998 = vmatprep.subr.bf16.mxu0 %v670
    %999 = vmatpush1.bf16.msra.mxu0 %v669
    %1000 = vmatprep.subr.bf16.mxu0 %v674
    %1001 = vmatpush1.bf16.msra.mxu0 %v673
    %1002 = vmatprep.subr.bf16.mxu0 %v678
    %1003 = vmatpush1.bf16.msra.mxu0 %v677
    %1004 = vmatprep.subr.bf16.mxu0 %v682
    %1005 = vmatpush1.bf16.msra.mxu0 %v681
    %1006 = vmatprep.subr.bf16.mxu0 0
    %1007 = vmatpush1.bf16.msra.mxu0 0
    %1008 = vmatprep.subr.bf16.mxu0 0
    %1009 = vmatpush1.bf16.msra.mxu0 0
    %1010 = vmatprep.subr.bf16.mxu0 0
    %1011 = vmatpush1.bf16.msra.mxu0 0
    %1012 = vmatprep.subr.bf16.mxu0 0
    %1013 = vmatpush1.bf16.msra.mxu0 0
    %1014 = vmatprep.subr.bf16.mxu0 0
    %1015 = vmatpush1.bf16.msra.mxu0 0
    %1016 = vmatprep.subr.bf16.mxu0 0
    %1017 = vmatpush1.bf16.msra.mxu0 0
    %1018 = vmatprep.subr.bf16.mxu0 0
    %1019 = vmatpush1.bf16.msra.mxu0 0
    %1020 = vmatprep.subr.bf16.mxu0 0
    %1021 = vmatpush1.bf16.msra.mxu0 0
    %1022 = vmatprep.mubr.bf16.mxu0 0
    %1023 = vmatmul.mubr.bf16.gmra.mrb[0].mxu0 %v948
    %v1024 = vpop.f32.mrb[0].mxu0
    %v1025 = vadd.f32 0.0, %v1024
    %v1026 = vpop.f32.mrb[0].mxu0
    %v1027 = vadd.f32 0.0, %v1026
    %v1028 = vpop.f32.mrb[0].mxu0
    %v1029 = vpop.f32.mrb[0].mxu0
    %1030 = vdwg.mxu0
    %v1031 = vadd.f32 %v944, %v984
    %v1032 = vadd.f32 %v945, %v986
    %v1033 = vadd.f32 %v946, %v1025
    %v1034 = vadd.f32 %v947, %v1027
    %v1035 = vxor.u32 %v1031, 2147483648
    %v1036 = vxor.u32 %v1032, 2147483648
    %v1037 = vxor.u32 %v1033, 2147483648
    %v1038 = vmul.f32 %v1035, 1.442695
    %v1039 = vpow.pop %v1038
    %v1040 = vmul.f32 %v1036, 1.442695
    %v1041 = vpow.pop %v1040
    %v1042 = vmul.f32 %v1037, 1.442695
    %v1043 = vpow.pop %v1042
    %v1044 = vadd.f32 %v1039, 1.0
    %v1045 = vadd.f32 %v1041, 1.0
    %v1046 = vadd.f32 %v1043, 1.0
    %v1047 = vrcp.pop %v1044
    %v1048 = vmul.f32 1.0, %v1047
    %v1049 = vrcp.pop %v1045
    %v1050 = vmul.f32 1.0, %v1049
    %v1051 = vrcp.pop %v1046
    %v1052 = vmul.f32 1.0, %v1051
    %v1053 = vtanh.pop %v1034
    %v1054 = vmul.f32 %v1050, %v939
    %v1055 = vmul.f32 %v1048, %v1053
    %v1056 = vadd.f32 %v1054, %v1055
    %v1057 = vtanh.pop %v1056
    %v1058 = vmul.f32 %v1052, %v1057
    %vm1059 = vcmp.gt.s32.totalorder %v518, 2
    %v1060 = vsel %vm1059, %v1058, %v943
    %v1061 = vld [vmem:[#allocation2 + $0x60] sm:$0xff]
    %v1062 = vld [vmem:[#allocation2 + $0x68] sm:$0xff]
    %v1063 = vld [vmem:[#allocation2 + $0x70] sm:$0xff]
    %v1064 = vld [vmem:[#allocation2 + $0x78] sm:$0xff]
    %v1065 = vpack.c.bf16 %v1060, %v1060
    %1066 = vmatprep.subr.bf16.mxu0 %v652
    %1067 = vmatpush1.bf16.msra.mxu0 %v651
    %1068 = vmatprep.subr.bf16.mxu0 %v656
    %1069 = vmatpush1.bf16.msra.mxu0 %v655
    %1070 = vmatprep.subr.bf16.mxu0 %v660
    %1071 = vmatpush1.bf16.msra.mxu0 %v659
    %1072 = vmatprep.subr.bf16.mxu0 %v664
    %1073 = vmatpush1.bf16.msra.mxu0 %v663
    %1074 = vmatprep.subr.bf16.mxu0 %v668
    %1075 = vmatpush1.bf16.msra.mxu0 %v667
    %1076 = vmatprep.subr.bf16.mxu0 %v672
    %1077 = vmatpush1.bf16.msra.mxu0 %v671
    %1078 = vmatprep.subr.bf16.mxu0 %v676
    %1079 = vmatpush1.bf16.msra.mxu0 %v675
    %1080 = vmatprep.subr.bf16.mxu0 %v680
    %1081 = vmatpush1.bf16.msra.mxu0 %v679
    %1082 = vmatprep.subr.bf16.mxu0 0
    %1083 = vmatpush1.bf16.msra.mxu0 0
    %1084 = vmatprep.subr.bf16.mxu0 0
    %1085 = vmatpush1.bf16.msra.mxu0 0
    %1086 = vmatprep.subr.bf16.mxu0 0
    %1087 = vmatpush1.bf16.msra.mxu0 0
    %1088 = vmatprep.subr.bf16.mxu0 0
    %1089 = vmatpush1.bf16.msra.mxu0 0
    %1090 = vmatprep.subr.bf16.mxu0 0
    %1091 = vmatpush1.bf16.msra.mxu0 0
    %1092 = vmatprep.subr.bf16.mxu0 0
    %1093 = vmatpush1.bf16.msra.mxu0 0
    %1094 = vmatprep.subr.bf16.mxu0 0
    %1095 = vmatpush1.bf16.msra.mxu0 0
    %1096 = vmatprep.subr.bf16.mxu0 0
    %1097 = vmatpush1.bf16.msra.mxu0 0
    %1098 = vmatprep.mubr.bf16.mxu0 0
    %1099 = vmatmul.mubr.bf16.gmra.mrb[0].mxu0 %v1065
    %v1100 = vpop.f32.mrb[0].mxu0
    %v1101 = vadd.f32 0.0, %v1100
    %v1102 = vpop.f32.mrb[0].mxu0
    %v1103 = vadd.f32 0.0, %v1102
    %v1104 = vpop.f32.mrb[0].mxu0
    %v1105 = vpop.f32.mrb[0].mxu0
    %1106 = vdwg.mxu0
    %1107 = vmatprep.subr.bf16.mxu0 %v654
    %1108 = vmatpush1.bf16.msra.mxu0 %v653
    %1109 = vmatprep.subr.bf16.mxu0 %v658
    %1110 = vmatpush1.bf16.msra.mxu0 %v657
    %1111 = vmatprep.subr.bf16.mxu0 %v662
    %1112 = vmatpush1.bf16.msra.mxu0 %v661
    %1113 = vmatprep.subr.bf16.mxu0 %v666
    %1114 = vmatpush1.bf16.msra.mxu0 %v665
    %1115 = vmatprep.subr.bf16.mxu0 %v670
    %1116 = vmatpush1.bf16.msra.mxu0 %v669
    %1117 = vmatprep.subr.bf16.mxu0 %v674
    %1118 = vmatpush1.bf16.msra.mxu0 %v673
    %1119 = vmatprep.subr.bf16.mxu0 %v678
    %1120 = vmatpush1.bf16.msra.mxu0 %v677
    %1121 = vmatprep.subr.bf16.mxu0 %v682
    %1122 = vmatpush1.bf16.msra.mxu0 %v681
    %1123 = vmatprep.subr.bf16.mxu0 0
    %1124 = vmatpush1.bf16.msra.mxu0 0
    %1125 = vmatprep.subr.bf16.mxu0 0
    %1126 = vmatpush1.bf16.msra.mxu0 0
    %1127 = vmatprep.subr.bf16.mxu0 0
    %1128 = vmatpush1.bf16.msra.mxu0 0
    %1129 = vmatprep.subr.bf16.mxu0 0
    %1130 = vmatpush1.bf16.msra.mxu0 0
    %1131 = vmatprep.subr.bf16.mxu0 0
    %1132 = vmatpush1.bf16.msra.mxu0 0
    %1133 = vmatprep.subr.bf16.mxu0 0
    %1134 = vmatpush1.bf16.msra.mxu0 0
    %1135 = vmatprep.subr.bf16.mxu0 0
    %1136 = vmatpush1.bf16.msra.mxu0 0
    %1137 = vmatprep.subr.bf16.mxu0 0
    %1138 = vmatpush1.bf16.msra.mxu0 0
    %1139 = vmatprep.mubr.bf16.mxu0 0
    %1140 = vmatmul.mubr.bf16.gmra.mrb[0].mxu0 %v1065
    %v1141 = vpop.f32.mrb[0].mxu0
    %v1142 = vadd.f32 0.0, %v1141
    %v1143 = vpop.f32.mrb[0].mxu0
    %v1144 = vadd.f32 0.0, %v1143
    %v1145 = vpop.f32.mrb[0].mxu0
    %v1146 = vpop.f32.mrb[0].mxu0
    %1147 = vdwg.mxu0
    %v1148 = vadd.f32 %v1061, %v1101
    %v1149 = vadd.f32 %v1062, %v1103
    %v1150 = vadd.f32 %v1063, %v1142
    %v1151 = vadd.f32 %v1064, %v1144
    %v1152 = vxor.u32 %v1148, 2147483648
    %v1153 = vxor.u32 %v1149, 2147483648
    %v1154 = vxor.u32 %v1150, 2147483648
    %v1155 = vmul.f32 %v1152, 1.442695
    %v1156 = vpow.pop %v1155
    %v1157 = vmul.f32 %v1153, 1.442695
    %v1158 = vpow.pop %v1157
    %v1159 = vmul.f32 %v1154, 1.442695
    %v1160 = vpow.pop %v1159
    %v1161 = vadd.f32 %v1156, 1.0
    %v1162 = vadd.f32 %v1158, 1.0
    %v1163 = vadd.f32 %v1160, 1.0
    %v1164 = vrcp.pop %v1161
    %v1165 = vmul.f32 1.0, %v1164
    %v1166 = vrcp.pop %v1162
    %v1167 = vmul.f32 1.0, %v1166
    %v1168 = vrcp.pop %v1163
    %v1169 = vmul.f32 1.0, %v1168
    %v1170 = vtanh.pop %v1151
    %v1171 = vmul.f32 %v1167, %v1056
    %v1172 = vmul.f32 %v1165, %v1170
    %v1173 = vadd.f32 %v1171, %v1172
    %v1174 = vtanh.pop %v1173
    %v1175 = vmul.f32 %v1169, %v1174
    %vm1176 = vcmp.gt.s32.totalorder %v518, 3
    %v1177 = vsel %vm1176, %v1175, %v1060
    %v1178 = vld [vmem:[#allocation2 + $0x80] sm:$0xff]
    %v1179 = vld [vmem:[#allocation2 + $0x88] sm:$0xff]
    %v1180 = vld [vmem:[#allocation2 + $0x90] sm:$0xff]
    %v1181 = vld [vmem:[#allocation2 + $0x98] sm:$0xff]
    %v1182 = vpack.c.bf16 %v1177, %v1177
    %1183 = vmatprep.subr.bf16.mxu0 %v652
    %1184 = vmatpush1.bf16.msra.mxu0 %v651
    %1185 = vmatprep.subr.bf16.mxu0 %v656
    %1186 = vmatpush1.bf16.msra.mxu0 %v655
    %1187 = vmatprep.subr.bf16.mxu0 %v660
    %1188 = vmatpush1.bf16.msra.mxu0 %v659
    %1189 = vmatprep.subr.bf16.mxu0 %v664
    %1190 = vmatpush1.bf16.msra.mxu0 %v663
    %1191 = vmatprep.subr.bf16.mxu0 %v668
    %1192 = vmatpush1.bf16.msra.mxu0 %v667
    %1193 = vmatprep.subr.bf16.mxu0 %v672
    %1194 = vmatpush1.bf16.msra.mxu0 %v671
    %1195 = vmatprep.subr.bf16.mxu0 %v676
    %1196 = vmatpush1.bf16.msra.mxu0 %v675
    %1197 = vmatprep.subr.bf16.mxu0 %v680
    %1198 = vmatpush1.bf16.msra.mxu0 %v679
    %1199 = vmatprep.subr.bf16.mxu0 0
    %1200 = vmatpush1.bf16.msra.mxu0 0
    %1201 = vmatprep.subr.bf16.mxu0 0
    %1202 = vmatpush1.bf16.msra.mxu0 0
    %1203 = vmatprep.subr.bf16.mxu0 0
    %1204 = vmatpush1.bf16.msra.mxu0 0
    %1205 = vmatprep.subr.bf16.mxu0 0
    %1206 = vmatpush1.bf16.msra.mxu0 0
    %1207 = vmatprep.subr.bf16.mxu0 0
    %1208 = vmatpush1.bf16.msra.mxu0 0
    %1209 = vmatprep.subr.bf16.mxu0 0
    %1210 = vmatpush1.bf16.msra.mxu0 0
    %1211 = vmatprep.subr.bf16.mxu0 0
    %1212 = vmatpush1.bf16.msra.mxu0 0
    %1213 = vmatprep.subr.bf16.mxu0 0
    %1214 = vmatpush1.bf16.msra.mxu0 0
    %1215 = vmatprep.mubr.bf16.mxu0 0
    %1216 = vmatmul.mubr.bf16.gmra.mrb[0].mxu0 %v1182
    %v1217 = vpop.f32.mrb[0].mxu0
    %v1218 = vadd.f32 0.0, %v1217
    %v1219 = vpop.f32.mrb[0].mxu0
    %v1220 = vadd.f32 0.0, %v1219
    %v1221 = vpop.f32.mrb[0].mxu0
    %v1222 = vpop.f32.mrb[0].mxu0
    %1223 = vdwg.mxu0
    %1224 = vmatprep.subr.bf16.mxu0 %v654
    %1225 = vmatpush1.bf16.msra.mxu0 %v653
    %1226 = vmatprep.subr.bf16.mxu0 %v658
    %1227 = vmatpush1.bf16.msra.mxu0 %v657
    %1228 = vmatprep.subr.bf16.mxu0 %v662
    %1229 = vmatpush1.bf16.msra.mxu0 %v661
    %1230 = vmatprep.subr.bf16.mxu0 %v666
    %1231 = vmatpush1.bf16.msra.mxu0 %v665
    %1232 = vmatprep.subr.bf16.mxu0 %v670
    %1233 = vmatpush1.bf16.msra.mxu0 %v669
    %1234 = vmatprep.subr.bf16.mxu0 %v674
    %1235 = vmatpush1.bf16.msra.mxu0 %v673
    %1236 = vmatprep.subr.bf16.mxu0 %v678
    %1237 = vmatpush1.bf16.msra.mxu0 %v677
    %1238 = vmatprep.subr.bf16.mxu0 %v682
    %1239 = vmatpush1.bf16.msra.mxu0 %v681
    %1240 = vmatprep.subr.bf16.mxu0 0
    %1241 = vmatpush1.bf16.msra.mxu0 0
    %1242 = vmatprep.subr.bf16.mxu0 0
    %1243 = vmatpush1.bf16.msra.mxu0 0
    %1244 = vmatprep.subr.bf16.mxu0 0
    %1245 = vmatpush1.bf16.msra.mxu0 0
    %1246 = vmatprep.subr.bf16.mxu0 0
    %1247 = vmatpush1.bf16.msra.mxu0 0
    %1248 = vmatprep.subr.bf16.mxu0 0
    %1249 = vmatpush1.bf16.msra.mxu0 0
    %1250 = vmatprep.subr.bf16.mxu0 0
    %1251 = vmatpush1.bf16.msra.mxu0 0
    %1252 = vmatprep.subr.bf16.mxu0 0
    %1253 = vmatpush1.bf16.msra.mxu0 0
    %1254 = vmatprep.subr.bf16.mxu0 0
    %1255 = vmatpush1.bf16.msra.mxu0 0
    %1256 = vmatprep.mubr.bf16.mxu0 0
    %1257 = vmatmul.mubr.bf16.gmra.mrb[0].mxu0 %v1182
    %v1258 = vpop.f32.mrb[0].mxu0
    %v1259 = vadd.f32 0.0, %v1258
    %v1260 = vpop.f32.mrb[0].mxu0
    %v1261 = vadd.f32 0.0, %v1260
    %v1262 = vpop.f32.mrb[0].mxu0
    %v1263 = vpop.f32.mrb[0].mxu0
    %1264 = vdwg.mxu0
    %v1265 = vadd.f32 %v1178, %v1218
    %v1266 = vadd.f32 %v1179, %v1220
    %v1267 = vadd.f32 %v1180, %v1259
    %v1268 = vadd.f32 %v1181, %v1261
    %v1269 = vxor.u32 %v1265, 2147483648
    %v1270 = vxor.u32 %v1266, 2147483648
    %v1271 = vxor.u32 %v1267, 2147483648
    %v1272 = vmul.f32 %v1269, 1.442695
    %v1273 = vpow.pop %v1272
    %v1274 = vmul.f32 %v1270, 1.442695
    %v1275 = vpow.pop %v1274
    %v1276 = vmul.f32 %v1271, 1.442695
    %v1277 = vpow.pop %v1276
    %v1278 = vadd.f32 %v1273, 1.0
    %v1279 = vadd.f32 %v1275, 1.0
    %v1280 = vadd.f32 %v1277, 1.0
    %v1281 = vrcp.pop %v1278
    %v1282 = vmul.f32 1.0, %v1281
    %v1283 = vrcp.pop %v1279
    %v1284 = vmul.f32 1.0, %v1283
    %v1285 = vrcp.pop %v1280
    %v1286 = vmul.f32 1.0, %v1285
    %v1287 = vtanh.pop %v1268
    %v1288 = vmul.f32 %v1284, %v1173
    %v1289 = vmul.f32 %v1282, %v1287
    %v1290 = vadd.f32 %v1288, %v1289
    %v1291 = vtanh.pop %v1290
    %v1292 = vmul.f32 %v1286, %v1291
    %vm1293 = vcmp.gt.s32.totalorder %v518, 4
    %v1294 = vsel %vm1293, %v1292, %v1177
    %v1295 = vld [vmem:[#allocation2 + $0xa0] sm:$0xff]
    %v1296 = vld [vmem:[#allocation2 + $0xa8] sm:$0xff]
    %v1297 = vld [vmem:[#allocation2 + $0xb0] sm:$0xff]
    %v1298 = vld [vmem:[#allocation2 + $0xb8] sm:$0xff]
    %v1299 = vpack.c.bf16 %v1294, %v1294
    %1300 = vmatprep.subr.bf16.mxu0 %v652
    %1301 = vmatpush1.bf16.msra.mxu0 %v651
    %1302 = vmatprep.subr.bf16.mxu0 %v656
    %1303 = vmatpush1.bf16.msra.mxu0 %v655
    %1304 = vmatprep.subr.bf16.mxu0 %v660
    %1305 = vmatpush1.bf16.msra.mxu0 %v659
    %1306 = vmatprep.subr.bf16.mxu0 %v664
    %1307 = vmatpush1.bf16.msra.mxu0 %v663
    %1308 = vmatprep.subr.bf16.mxu0 %v668
    %1309 = vmatpush1.bf16.msra.mxu0 %v667
    %1310 = vmatprep.subr.bf16.mxu0 %v672
    %1311 = vmatpush1.bf16.msra.mxu0 %v671
    %1312 = vmatprep.subr.bf16.mxu0 %v676
    %1313 = vmatpush1.bf16.msra.mxu0 %v675
    %1314 = vmatprep.subr.bf16.mxu0 %v680
    %1315 = vmatpush1.bf16.msra.mxu0 %v679
    %1316 = vmatprep.subr.bf16.mxu0 0
    %1317 = vmatpush1.bf16.msra.mxu0 0
    %1318 = vmatprep.subr.bf16.mxu0 0
    %1319 = vmatpush1.bf16.msra.mxu0 0
    %1320 = vmatprep.subr.bf16.mxu0 0
    %1321 = vmatpush1.bf16.msra.mxu0 0
    %1322 = vmatprep.subr.bf16.mxu0 0
    %1323 = vmatpush1.bf16.msra.mxu0 0
    %1324 = vmatprep.subr.bf16.mxu0 0
    %1325 = vmatpush1.bf16.msra.mxu0 0
    %1326 = vmatprep.subr.bf16.mxu0 0
    %1327 = vmatpush1.bf16.msra.mxu0 0
    %1328 = vmatprep.subr.bf16.mxu0 0
    %1329 = vmatpush1.bf16.msra.mxu0 0
    %1330 = vmatprep.subr.bf16.mxu0 0
    %1331 = vmatpush1.bf16.msra.mxu0 0
    %1332 = vmatprep.mubr.bf16.mxu0 0
    %1333 = vmatmul.mubr.bf16.gmra.mrb[0].mxu0 %v1299
    %v1334 = vpop.f32.mrb[0].mxu0
    %v1335 = vadd.f32 0.0, %v1334
    %v1336 = vpop.f32.mrb[0].mxu0
    %v1337 = vadd.f32 0.0, %v1336
    %v1338 = vpop.f32.mrb[0].mxu0
    %v1339 = vpop.f32.mrb[0].mxu0
    %1340 = vdwg.mxu0
    %1341 = vmatprep.subr.bf16.mxu0 %v654
    %1342 = vmatpush1.bf16.msra.mxu0 %v653
    %1343 = vmatprep.subr.bf16.mxu0 %v658
    %1344 = vmatpush1.bf16.msra.mxu0 %v657
    %1345 = vmatprep.subr.bf16.mxu0 %v662
    %1346 = vmatpush1.bf16.msra.mxu0 %v661
    %1347 = vmatprep.subr.bf16.mxu0 %v666
    %1348 = vmatpush1.bf16.msra.mxu0 %v665
    %1349 = vmatprep.subr.bf16.mxu0 %v670
    %1350 = vmatpush1.bf16.msra.mxu0 %v669
    %1351 = vmatprep.subr.bf16.mxu0 %v674
    %1352 = vmatpush1.bf16.msra.mxu0 %v673
    %1353 = vmatprep.subr.bf16.mxu0 %v678
    %1354 = vmatpush1.bf16.msra.mxu0 %v677
    %1355 = vmatprep.subr.bf16.mxu0 %v682
    %1356 = vmatpush1.bf16.msra.mxu0 %v681
    %1357 = vmatprep.subr.bf16.mxu0 0
    %1358 = vmatpush1.bf16.msra.mxu0 0
    %1359 = vmatprep.subr.bf16.mxu0 0
    %1360 = vmatpush1.bf16.msra.mxu0 0
    %1361 = vmatprep.subr.bf16.mxu0 0
    %1362 = vmatpush1.bf16.msra.mxu0 0
    %1363 = vmatprep.subr.bf16.mxu0 0
    %1364 = vmatpush1.bf16.msra.mxu0 0
    %1365 = vmatprep.subr.bf16.mxu0 0
    %1366 = vmatpush1.bf16.msra.mxu0 0
    %1367 = vmatprep.subr.bf16.mxu0 0
    %1368 = vmatpush1.bf16.msra.mxu0 0
    %1369 = vmatprep.subr.bf16.mxu0 0
    %1370 = vmatpush1.bf16.msra.mxu0 0
    %1371 = vmatprep.subr.bf16.mxu0 0
    %1372 = vmatpush1.bf16.msra.mxu0 0
    %1373 = vmatprep.mubr.bf16.mxu0 0
    %1374 = vmatmul.mubr.bf16.gmra.mrb[0].mxu0 %v1299
    %v1375 = vpop.f32.mrb[0].mxu0
    %v1376 = vadd.f32 0.0, %v1375
    %v1377 = vpop.f32.mrb[0].mxu0
    %v1378 = vadd.f32 0.0, %v1377
    %v1379 = vpop.f32.mrb[0].mxu0
    %v1380 = vpop.f32.mrb[0].mxu0
    %1381 = vdwg.mxu0
    %v1382 = vadd.f32 %v1295, %v1335
    %v1383 = vadd.f32 %v1296, %v1337
    %v1384 = vadd.f32 %v1297, %v1376
    %v1385 = vadd.f32 %v1298, %v1378
    %v1386 = vxor.u32 %v1382, 2147483648
    %v1387 = vxor.u32 %v1383, 2147483648
    %v1388 = vxor.u32 %v1384, 2147483648
    %v1389 = vmul.f32 %v1386, 1.442695
    %v1390 = vpow.pop %v1389
    %v1391 = vmul.f32 %v1387, 1.442695
    %v1392 = vpow.pop %v1391
    %v1393 = vmul.f32 %v1388, 1.442695
    %v1394 = vpow.pop %v1393
    %v1395 = vadd.f32 %v1390, 1.0
    %v1396 = vadd.f32 %v1392, 1.0
    %v1397 = vadd.f32 %v1394, 1.0
    %v1398 = vrcp.pop %v1395
    %v1399 = vmul.f32 1.0, %v1398
    %v1400 = vrcp.pop %v1396
    %v1401 = vmul.f32 1.0, %v1400
    %v1402 = vrcp.pop %v1397
    %v1403 = vmul.f32 1.0, %v1402
    %v1404 = vtanh.pop %v1385
    %v1405 = vmul.f32 %v1401, %v1290
    %v1406 = vmul.f32 %v1399, %v1404
    %v1407 = vadd.f32 %v1405, %v1406
    %v1408 = vtanh.pop %v1407
    %v1409 = vmul.f32 %v1403, %v1408
    %vm1410 = vcmp.gt.s32.totalorder %v518, 5
    %v1411 = vsel %vm1410, %v1409, %v1294
    %v1412 = vld [vmem:[#allocation2 + $0xc0] sm:$0xff]
    %v1413 = vld [vmem:[#allocation2 + $0xc8] sm:$0xff]
    %v1414 = vld [vmem:[#allocation2 + $0xd0] sm:$0xff]
    %v1415 = vld [vmem:[#allocation2 + $0xd8] sm:$0xff]
    %v1416 = vpack.c.bf16 %v1411, %v1411
    %1417 = vmatprep.subr.bf16.mxu0 %v652
    %1418 = vmatpush1.bf16.msra.mxu0 %v651
    %1419 = vmatprep.subr.bf16.mxu0 %v656
    %1420 = vmatpush1.bf16.msra.mxu0 %v655
    %1421 = vmatprep.subr.bf16.mxu0 %v660
    %1422 = vmatpush1.bf16.msra.mxu0 %v659
    %1423 = vmatprep.subr.bf16.mxu0 %v664
    %1424 = vmatpush1.bf16.msra.mxu0 %v663
    %1425 = vmatprep.subr.bf16.mxu0 %v668
    %1426 = vmatpush1.bf16.msra.mxu0 %v667
    %1427 = vmatprep.subr.bf16.mxu0 %v672
    %1428 = vmatpush1.bf16.msra.mxu0 %v671
    %1429 = vmatprep.subr.bf16.mxu0 %v676
    %1430 = vmatpush1.bf16.msra.mxu0 %v675
    %1431 = vmatprep.subr.bf16.mxu0 %v680
    %1432 = vmatpush1.bf16.msra.mxu0 %v679
    %1433 = vmatprep.subr.bf16.mxu0 0
    %1434 = vmatpush1.bf16.msra.mxu0 0
    %1435 = vmatprep.subr.bf16.mxu0 0
    %1436 = vmatpush1.bf16.msra.mxu0 0
    %1437 = vmatprep.subr.bf16.mxu0 0
    %1438 = vmatpush1.bf16.msra.mxu0 0
    %1439 = vmatprep.subr.bf16.mxu0 0
    %1440 = vmatpush1.bf16.msra.mxu0 0
    %1441 = vmatprep.subr.bf16.mxu0 0
    %1442 = vmatpush1.bf16.msra.mxu0 0
    %1443 = vmatprep.subr.bf16.mxu0 0
    %1444 = vmatpush1.bf16.msra.mxu0 0
    %1445 = vmatprep.subr.bf16.mxu0 0
    %1446 = vmatpush1.bf16.msra.mxu0 0
    %1447 = vmatprep.subr.bf16.mxu0 0
    %1448 = vmatpush1.bf16.msra.mxu0 0
    %1449 = vmatprep.mubr.bf16.mxu0 0
    %1450 = vmatmul.mubr.bf16.gmra.mrb[0].mxu0 %v1416
    %v1451 = vpop.f32.mrb[0].mxu0
    %v1452 = vadd.f32 0.0, %v1451
    %v1453 = vpop.f32.mrb[0].mxu0
    %v1454 = vadd.f32 0.0, %v1453
    %v1455 = vpop.f32.mrb[0].mxu0
    %v1456 = vpop.f32.mrb[0].mxu0
    %1457 = vdwg.mxu0
    %1458 = vmatprep.subr.bf16.mxu0 %v654
    %1459 = vmatpush1.bf16.msra.mxu0 %v653
    %1460 = vmatprep.subr.bf16.mxu0 %v658
    %1461 = vmatpush1.bf16.msra.mxu0 %v657
    %1462 = vmatprep.subr.bf16.mxu0 %v662
    %1463 = vmatpush1.bf16.msra.mxu0 %v661
    %1464 = vmatprep.subr.bf16.mxu0 %v666
    %1465 = vmatpush1.bf16.msra.mxu0 %v665
    %1466 = vmatprep.subr.bf16.mxu0 %v670
    %1467 = vmatpush1.bf16.msra.mxu0 %v669
    %1468 = vmatprep.subr.bf16.mxu0 %v674
    %1469 = vmatpush1.bf16.msra.mxu0 %v673
    %1470 = vmatprep.subr.bf16.mxu0 %v678
    %1471 = vmatpush1.bf16.msra.mxu0 %v677
    %1472 = vmatprep.subr.bf16.mxu0 %v682
    %1473 = vmatpush1.bf16.msra.mxu0 %v681
    %1474 = vmatprep.subr.bf16.mxu0 0
    %1475 = vmatpush1.bf16.msra.mxu0 0
    %1476 = vmatprep.subr.bf16.mxu0 0
    %1477 = vmatpush1.bf16.msra.mxu0 0
    %1478 = vmatprep.subr.bf16.mxu0 0
    %1479 = vmatpush1.bf16.msra.mxu0 0
    %1480 = vmatprep.subr.bf16.mxu0 0
    %1481 = vmatpush1.bf16.msra.mxu0 0
    %1482 = vmatprep.subr.bf16.mxu0 0
    %1483 = vmatpush1.bf16.msra.mxu0 0
    %1484 = vmatprep.subr.bf16.mxu0 0
    %1485 = vmatpush1.bf16.msra.mxu0 0
    %1486 = vmatprep.subr.bf16.mxu0 0
    %1487 = vmatpush1.bf16.msra.mxu0 0
    %1488 = vmatprep.subr.bf16.mxu0 0
    %1489 = vmatpush1.bf16.msra.mxu0 0
    %1490 = vmatprep.mubr.bf16.mxu0 0
    %1491 = vmatmul.mubr.bf16.gmra.mrb[0].mxu0 %v1416
    %v1492 = vpop.f32.mrb[0].mxu0
    %v1493 = vadd.f32 0.0, %v1492
    %v1494 = vpop.f32.mrb[0].mxu0
    %v1495 = vadd.f32 0.0, %v1494
    %v1496 = vpop.f32.mrb[0].mxu0
    %v1497 = vpop.f32.mrb[0].mxu0
    %1498 = vdwg.mxu0
    %v1499 = vadd.f32 %v1412, %v1452
    %v1500 = vadd.f32 %v1413, %v1454
    %v1501 = vadd.f32 %v1414, %v1493
    %v1502 = vadd.f32 %v1415, %v1495
    %v1503 = vxor.u32 %v1499, 2147483648
    %v1504 = vxor.u32 %v1500, 2147483648
    %v1505 = vxor.u32 %v1501, 2147483648
    %v1506 = vmul.f32 %v1503, 1.442695
    %v1507 = vpow.pop %v1506
    %v1508 = vmul.f32 %v1504, 1.442695
    %v1509 = vpow.pop %v1508
    %v1510 = vmul.f32 %v1505, 1.442695
    %v1511 = vpow.pop %v1510
    %v1512 = vadd.f32 %v1507, 1.0
    %v1513 = vadd.f32 %v1509, 1.0
    %v1514 = vadd.f32 %v1511, 1.0
    %v1515 = vrcp.pop %v1512
    %v1516 = vmul.f32 1.0, %v1515
    %v1517 = vrcp.pop %v1513
    %v1518 = vmul.f32 1.0, %v1517
    %v1519 = vrcp.pop %v1514
    %v1520 = vmul.f32 1.0, %v1519
    %v1521 = vtanh.pop %v1502
    %v1522 = vmul.f32 %v1518, %v1407
    %v1523 = vmul.f32 %v1516, %v1521
    %v1524 = vadd.f32 %v1522, %v1523
    %v1525 = vtanh.pop %v1524
    %v1526 = vmul.f32 %v1520, %v1525
    %vm1527 = vcmp.gt.s32.totalorder %v518, 6
    %v1528 = vsel %vm1527, %v1526, %v1411
    %v1529 = vld [vmem:[#allocation2 + $0xe0] sm:$0xff]
    %v1530 = vld [vmem:[#allocation2 + $0xe8] sm:$0xff]
    %v1531 = vld [vmem:[#allocation2 + $0xf0] sm:$0xff]
    %v1532 = vld [vmem:[#allocation2 + $0xf8] sm:$0xff]
    %v1533 = vpack.c.bf16 %v1528, %v1528
    %1534 = vmatprep.subr.bf16.mxu0 %v652
    %1535 = vmatpush1.bf16.msra.mxu0 %v651
    %1536 = vmatprep.subr.bf16.mxu0 %v656
    %1537 = vmatpush1.bf16.msra.mxu0 %v655
    %1538 = vmatprep.subr.bf16.mxu0 %v660
    %1539 = vmatpush1.bf16.msra.mxu0 %v659
    %1540 = vmatprep.subr.bf16.mxu0 %v664
    %1541 = vmatpush1.bf16.msra.mxu0 %v663
    %1542 = vmatprep.subr.bf16.mxu0 %v668
    %1543 = vmatpush1.bf16.msra.mxu0 %v667
    %1544 = vmatprep.subr.bf16.mxu0 %v672
    %1545 = vmatpush1.bf16.msra.mxu0 %v671
    %1546 = vmatprep.subr.bf16.mxu0 %v676
    %1547 = vmatpush1.bf16.msra.mxu0 %v675
    %1548 = vmatprep.subr.bf16.mxu0 %v680
    %1549 = vmatpush1.bf16.msra.mxu0 %v679
    %1550 = vmatprep.subr.bf16.mxu0 0
    %1551 = vmatpush1.bf16.msra.mxu0 0
    %1552 = vmatprep.subr.bf16.mxu0 0
    %1553 = vmatpush1.bf16.msra.mxu0 0
    %1554 = vmatprep.subr.bf16.mxu0 0
    %1555 = vmatpush1.bf16.msra.mxu0 0
    %1556 = vmatprep.subr.bf16.mxu0 0
    %1557 = vmatpush1.bf16.msra.mxu0 0
    %1558 = vmatprep.subr.bf16.mxu0 0
    %1559 = vmatpush1.bf16.msra.mxu0 0
    %1560 = vmatprep.subr.bf16.mxu0 0
    %1561 = vmatpush1.bf16.msra.mxu0 0
    %1562 = vmatprep.subr.bf16.mxu0 0
    %1563 = vmatpush1.bf16.msra.mxu0 0
    %1564 = vmatprep.subr.bf16.mxu0 0
    %1565 = vmatpush1.bf16.msra.mxu0 0
    %1566 = vmatprep.mubr.bf16.mxu0 0
    %1567 = vmatmul.mubr.bf16.gmra.mrb[0].mxu0 %v1533
    %v1568 = vpop.f32.mrb[0].mxu0
    %v1569 = vadd.f32 0.0, %v1568
    %v1570 = vpop.f32.mrb[0].mxu0
    %v1571 = vadd.f32 0.0, %v1570
    %v1572 = vpop.f32.mrb[0].mxu0
    %v1573 = vpop.f32.mrb[0].mxu0
    %1574 = vdwg.mxu0
    %1575 = vmatprep.subr.bf16.mxu0 %v654
    %1576 = vmatpush1.bf16.msra.mxu0 %v653
    %1577 = vmatprep.subr.bf16.mxu0 %v658
    %1578 = vmatpush1.bf16.msra.mxu0 %v657
    %1579 = vmatprep.subr.bf16.mxu0 %v662
    %1580 = vmatpush1.bf16.msra.mxu0 %v661
    %1581 = vmatprep.subr.bf16.mxu0 %v666
    %1582 = vmatpush1.bf16.msra.mxu0 %v665
    %1583 = vmatprep.subr.bf16.mxu0 %v670
    %1584 = vmatpush1.bf16.msra.mxu0 %v669
    %1585 = vmatprep.subr.bf16.mxu0 %v674
    %1586 = vmatpush1.bf16.msra.mxu0 %v673
    %1587 = vmatprep.subr.bf16.mxu0 %v678
    %1588 = vmatpush1.bf16.msra.mxu0 %v677
    %1589 = vmatprep.subr.bf16.mxu0 %v682
    %1590 = vmatpush1.bf16.msra.mxu0 %v681
    %1591 = vmatprep.subr.bf16.mxu0 0
    %1592 = vmatpush1.bf16.msra.mxu0 0
    %1593 = vmatprep.subr.bf16.mxu0 0
    %1594 = vmatpush1.bf16.msra.mxu0 0
    %1595 = vmatprep.subr.bf16.mxu0 0
    %1596 = vmatpush1.bf16.msra.mxu0 0
    %1597 = vmatprep.subr.bf16.mxu0 0
    %1598 = vmatpush1.bf16.msra.mxu0 0
    %1599 = vmatprep.subr.bf16.mxu0 0
    %1600 = vmatpush1.bf16.msra.mxu0 0
    %1601 = vmatprep.subr.bf16.mxu0 0
    %1602 = vmatpush1.bf16.msra.mxu0 0
    %1603 = vmatprep.subr.bf16.mxu0 0
    %1604 = vmatpush1.bf16.msra.mxu0 0
    %1605 = vmatprep.subr.bf16.mxu0 0
    %1606 = vmatpush1.bf16.msra.mxu0 0
    %1607 = vmatprep.mubr.bf16.mxu0 0
    %1608 = vmatmul.mubr.bf16.gmra.mrb[0].mxu0 %v1533
    %v1609 = vpop.f32.mrb[0].mxu0
    %v1610 = vadd.f32 0.0, %v1609
    %v1611 = vpop.f32.mrb[0].mxu0
    %v1612 = vadd.f32 0.0, %v1611
    %v1613 = vpop.f32.mrb[0].mxu0
    %v1614 = vpop.f32.mrb[0].mxu0
    %1615 = vdwg.mxu0
    %v1616 = vadd.f32 %v1529, %v1569
    %v1617 = vadd.f32 %v1530, %v1571
    %v1618 = vadd.f32 %v1531, %v1610
    %v1619 = vadd.f32 %v1532, %v1612
    %v1620 = vxor.u32 %v1616, 2147483648
    %v1621 = vxor.u32 %v1617, 2147483648
    %v1622 = vxor.u32 %v1618, 2147483648
    %v1623 = vmul.f32 %v1620, 1.442695
    %v1624 = vpow.pop %v1623
    %v1625 = vmul.f32 %v1621, 1.442695
    %v1626 = vpow.pop %v1625
    %v1627 = vmul.f32 %v1622, 1.442695
    %v1628 = vpow.pop %v1627
    %v1629 = vadd.f32 %v1624, 1.0
    %v1630 = vadd.f32 %v1626, 1.0
    %v1631 = vadd.f32 %v1628, 1.0
    %v1632 = vrcp.pop %v1629
    %v1633 = vmul.f32 1.0, %v1632
    %v1634 = vrcp.pop %v1630
    %v1635 = vmul.f32 1.0, %v1634
    %v1636 = vrcp.pop %v1631
    %v1637 = vmul.f32 1.0, %v1636
    %v1638 = vtanh.pop %v1619
    %v1639 = vmul.f32 %v1635, %v1524
    %v1640 = vmul.f32 %v1633, %v1638
    %v1641 = vadd.f32 %v1639, %v1640
    %v1642 = vtanh.pop %v1641
    %v1643 = vmul.f32 %v1637, %v1642
    %vm1644 = vcmp.gt.s32.totalorder %v518, 7
    %v1645 = vsel %vm1644, %v1643, %v1528
    %v1646 = vpack.c.bf16 %v1645, %v1645
    %v1647 = vld [vmem:[#allocation11] sm:$0xf]
    %v1648 = vld [vmem:[#allocation11 + $0x4] sm:$0xf]
    %v1649 = vld [vmem:[#allocation11 + $0x8] sm:$0xf]
    %v1650 = vld [vmem:[#allocation11 + $0xc] sm:$0xf]
    %v1651 = vld [vmem:[#allocation11 + $0x10] sm:$0xf]
    %v1652 = vld [vmem:[#allocation11 + $0x14] sm:$0xf]
    %v1653 = vld [vmem:[#allocation11 + $0x18] sm:$0xf]
    %v1654 = vld [vmem:[#allocation11 + $0x1c] sm:$0xf]
    %v1655 = vld [vmem:[#allocation11 + $0x20] sm:$0xf]
    %v1656 = vld [vmem:[#allocation11 + $0x24] sm:$0xf]
    %v1657 = vld [vmem:[#allocation11 + $0x28] sm:$0xf]
    %v1658 = vld [vmem:[#allocation11 + $0x2c] sm:$0xf]
    %v1659 = vld [vmem:[#allocation11 + $0x30] sm:$0xf]
    %v1660 = vld [vmem:[#allocation11 + $0x34] sm:$0xf]
    %v1661 = vld [vmem:[#allocation11 + $0x38] sm:$0xf]
    %v1662 = vld [vmem:[#allocation11 + $0x3c] sm:$0xf]
    %v1663 = vld [vmem:[%s6] sm:$0x1]
    %v1665 = vlaneseq
    %v1666 = vshrl.u32 %v1665, 7
    %v1667 = vsub.s32 0, %v1666
    %v1668 = vrot.slane %v1663, %v1667
    %v1686 = vunpack.c.l.b16 %v1647
    %v1687 = vunpack.c.l.b16 %v1648
    %v1688 = vunpack.c.l.b16 %v1649
    %v1689 = vunpack.c.l.b16 %v1650
    %v1690 = vunpack.c.l.b16 %v1651
    %v1691 = vunpack.c.l.b16 %v1652
    %v1692 = vunpack.c.l.b16 %v1653
    %v1693 = vunpack.c.l.b16 %v1654
    %v1694 = vunpack.c.l.b16 %v1655
    %v1695 = vunpack.c.l.b16 %v1656
    %v1696 = vunpack.c.l.b16 %v1657
    %v1697 = vunpack.c.l.b16 %v1658
    %v1698 = vunpack.c.l.b16 %v1659
    %v1699 = vunpack.c.l.b16 %v1660
    %v1700 = vunpack.c.l.b16 %v1661
    %v1701 = vunpack.c.l.b16 %v1662
    %v1702 = vpack.c.b16 %v1687, %v1686
    %v1703 = vpack.c.b16 %v1689, %v1688
    %v1704 = vpack.c.b16 %v1691, %v1690
    %v1705 = vpack.c.b16 %v1693, %v1692
    %v1706 = vpack.c.b16 %v1695, %v1694
    %v1707 = vpack.c.b16 %v1697, %v1696
    %v1708 = vpack.c.b16 %v1699, %v1698
    %v1709 = vpack.c.b16 %v1701, %v1700
    %1718 = vmatprep.subr.bf16.mxu0 0
    %1719 = vmatpush1.bf16.msra.mxu0 %v1702
    %1720 = vmatprep.subr.bf16.mxu0 0
    %1721 = vmatpush1.bf16.msra.mxu0 %v1703
    %1722 = vmatprep.subr.bf16.mxu0 0
    %1723 = vmatpush1.bf16.msra.mxu0 %v1704
    %1724 = vmatprep.subr.bf16.mxu0 0
    %1725 = vmatpush1.bf16.msra.mxu0 %v1705
    %1726 = vmatprep.subr.bf16.mxu0 0
    %1727 = vmatpush1.bf16.msra.mxu0 %v1706
    %1728 = vmatprep.subr.bf16.mxu0 0
    %1729 = vmatpush1.bf16.msra.mxu0 %v1707
    %1730 = vmatprep.subr.bf16.mxu0 0
    %1731 = vmatpush1.bf16.msra.mxu0 %v1708
    %1732 = vmatprep.subr.bf16.mxu0 0
    %1733 = vmatpush1.bf16.msra.mxu0 %v1709
    %1734 = vmatprep.subr.bf16.mxu0 0
    %1735 = vmatpush1.bf16.msra.mxu0 0
    %1736 = vmatprep.subr.bf16.mxu0 0
    %1737 = vmatpush1.bf16.msra.mxu0 0
    %1738 = vmatprep.subr.bf16.mxu0 0
    %1739 = vmatpush1.bf16.msra.mxu0 0
    %1740 = vmatprep.subr.bf16.mxu0 0
    %1741 = vmatpush1.bf16.msra.mxu0 0
    %1742 = vmatprep.subr.bf16.mxu0 0
    %1743 = vmatpush1.bf16.msra.mxu0 0
    %1744 = vmatprep.subr.bf16.mxu0 0
    %1745 = vmatpush1.bf16.msra.mxu0 0
    %1746 = vmatprep.subr.bf16.mxu0 0
    %1747 = vmatpush1.bf16.msra.mxu0 0
    %1748 = vmatprep.subr.bf16.mxu0 0
    %1749 = vmatpush1.bf16.msra.mxu0 0
    %1750 = vmatprep.mubr.bf16.mxu0 0
    %1751 = vmatmul.mubr.bf16.gmra.mrb[0].mxu0 %v1646
    %v1752 = vpop.f32.mrb[0].mxu0
    %v1753 = vadd.f32 %v1668, %v1752
    %v1754 = vpop.f32.mrb[0].mxu0
    %v1755 = vpop.f32.mrb[0].mxu0
    %v1756 = vpop.f32.mrb[0].mxu0
    %1757 = vdwg.mxu0
    %1758 = vst [vmem:[#allocation12] sm:$0xff] %v1753
    // Predicated region
    $region50: #{tpu_custom_call.1} parent=1 // pred_check
      _
    $region51: #{tpu_custom_call.1} parent=1 // pred_check_branch
      %1760 = sbr.rel (0) target = $region53
    $region52: #{tpu_custom_call.1} parent=1 // pred_region
      %s1762 = ssub.s32 128, 128
      %1763 = vsyncadd [#allocation5], %s1762
      %s1765 = sshll.u32 [#allocation12], 4
      %s1766 = int_to_ptr.vmem [resolvable:$true] %s1765
      %1768 = dma.vmem_to_hbm [thread:$0]  %s1766, 128, %s7, [#allocation5]
    $region53: #{tpu_custom_call.1} parent=1 // pred_fallthru
      _
    // Predicated region
    $region54: #{tpu_custom_call.1} parent=1 // pred_check
      _
    $region55: #{tpu_custom_call.1} parent=1 // pred_check_branch
      %1770 = sbr.rel (0) target = $region57
    $region56: #{tpu_custom_call.1} parent=1 // pred_region
      %1771 = dma.done [#allocation5], 128
    $region57: #{tpu_custom_call.1} parent=1 // pred_fallthru
      _
    %1772 = vsyncpa [#allocation4], 1
    %1773 = vsyncpa [#allocation7], 1
    %1774 = vsyncpa [#allocation10], 1
    %1775 = vsyncpa [#allocation5], 1

</llo_original>
